<compile_context>
chip_gen: v5e
topology: v5e:2x2
jax: 0.10.0
libtpu: 0.0.40
codegen_flags: <defaults>
</compile_context>

<pallas_src>
import functools

import jax
import jax.numpy as jnp
from jax import lax
from jax.experimental import pallas as pl
from jax.experimental.pallas import tpu as pltpu

HIDDEN = 32      # per-direction hidden size (hidden_dim // 2)
IN_DIM = 20
OUT_DIM = 12
OUT_PAD = 128    # lane-dense padded output width (sliced back to OUT_DIM in wrapper)


def _lstmaa_kernel(x_ref,        # (T, BT, IN_DIM)       time-major, batch-tile
                   wih_ref,      # (IN_DIM, 8H)   cols: [i_f i_r | f_f f_r | o_f o_r | g_f g_r]
                   whh_ref,      # (2H, 8H)       block-sparse by direction, same col order
                   b_ref,        # (1, 8H)        b_ih + b_hh, packed like the columns
                   wout_ref,     # (2H, OUT_PAD)  hidden2target, zero-padded cols
                   bout_ref,     # (1, OUT_PAD)
                   out_ref,      # (T, BT, OUT_PAD)
                   xw_ref,       # scratch (T, BT, 8H): x@W_ih + b, all steps & dirs
                   h_ref,        # scratch (T, BT, 2H): [h_fwd | h_rev] per original time
                   *, T, BT, compute_dtype):
    H = HIDDEN
    cd = compute_dtype

    # ---- 1) input projection for all timesteps & both directions: ONE matmul ----
    # (bias broadcast happens once here, not inside the loop)
    x2d = x_ref[...].reshape(T * BT, IN_DIM).astype(cd)
    xw_ref[...] = (
        jnp.dot(x2d, wih_ref[...].astype(cd), preferred_element_type=jnp.float32)
        + b_ref[...]
    ).reshape(T, BT, 8 * H)

    whh = whh_ref[...].astype(cd)   # fused recurrent weight, loaded/cast once

    # constant direction mask, hoisted out of the loop:
    # within each 64-lane gate block, lanes 0:32 belong to fwd, 32:64 to rev.
    col = lax.broadcasted_iota(jnp.int32, (BT, 8 * H), 1)
    fwd_mask = (col % (2 * H)) < H

    # ---- 2) recurrence: fwd and rev directions advance together -----------------
    h = jnp.zeros((BT, 2 * H), jnp.float32)   # [h_fwd | h_rev]  (loop carry, vregs)
    c = jnp.zeros((BT, 2 * H), jnp.float32)   # [c_fwd | c_rev]  (kept f32 always)

    # T is small & static -> fully unrolled; all ref indexing below is static.
    for t in range(T):
        tr = T - 1 - t

        # one (BT,64)@(64,256) MXU push covers both directions' recurrent gates
        rec = jnp.dot(h.astype(cd), whh, preferred_element_type=jnp.float32)
        # fwd gate columns consume x[t], rev gate columns consume x[T-1-t]
        pre = jnp.where(fwd_mask, xw_ref[t], xw_ref[tr])
        gates = rec + pre                                   # (BT, 8H) = [i|f|o|g]

        # sigmoid only on i/f/o (192 lanes), tanh only on g (64 lanes)
        ifo = jax.nn.sigmoid(gates[:, 0:6 * H])
        g_g = jnp.tanh(gates[:, 6 * H:8 * H])
        i_g = ifo[:, 0:2 * H]
        f_g = ifo[:, 2 * H:4 * H]
        o_g = ifo[:, 4 * H:6 * H]

        c = f_g * c + i_g * g_g
        h = o_g * jnp.tanh(c)                 # (BT, 2H) = [h_fwd(t) | h_rev(T-1-t)]

        # stash per-time hidden states (off the critical carry chain)
        h_ref[t, :, 0:H] = h[:, 0:H]
        h_ref[tr, :, H:2 * H] = h[:, H:2 * H]

    # ---- 3) output projection: one batched, lane-dense K=64 matmul --------------
    out_ref[...] = (
        jnp.dot(h_ref[...].reshape(T * BT, 2 * H), wout_ref[...],
                preferred_element_type=jnp.float32)
        + bout_ref[...]
    ).reshape(T, BT, OUT_PAD)


def lstmaa_forward(x, params, *, compute_dtype=jnp.float32, batch_tile=128):
    """x: (B, T, IN_DIM) float32, batch_first like the PyTorch module. Returns (B, T, 12)."""
    B, T, D = x.shape
    assert D == IN_DIM

    # Pad batch to a sublane multiple; keep the whole padded batch as the M dim of
    # the per-step matmul up to `batch_tile` rows, and grid over tiles beyond that.
    B8 = ((B + 7) // 8) * 8
    if B8 <= batch_tile:
        BT = max(8, B8)
        Bp = BT
    else:
        BT = batch_tile
        Bp = ((B8 + BT - 1) // BT) * BT
    num_tiles = Bp // BT

    # time-major, batch-padded layout so every kernel access is tile aligned
    x_tm = jnp.transpose(x, (1, 0, 2))                       # (T, B, D)
    x_tm = jnp.pad(x_tm, ((0, 0), (0, Bp - B), (0, 0)))      # (T, Bp, D)

    # explicit VMEM budget (lane-padded rows), capped well under v7x's physical VMEM
    lane = lambda n: ((n + 127) // 128) * 128
    per_row = 4 * (lane(IN_DIM) + OUT_PAD + 8 * HIDDEN + lane(2 * HIDDEN))
    est = T * BT * per_row * 2 + (2 << 20)     # x2 for double-buffered blocks + weights
    vmem_limit = int(min(48 << 20, max(est, 4 << 20)))

    grid_spec = pltpu.PrefetchScalarGridSpec(
        num_scalar_prefetch=0,
        grid=(num_tiles,),
        in_specs=[
            pl.BlockSpec((T, BT, IN_DIM), lambda b: (0, b, 0)),
            pl.BlockSpec((IN_DIM, 8 * HIDDEN), lambda b: (0, 0)),
            pl.BlockSpec((2 * HIDDEN, 8 * HIDDEN), lambda b: (0, 0)),
            pl.BlockSpec((1, 8 * HIDDEN), lambda b: (0, 0)),
            pl.BlockSpec((2 * HIDDEN, OUT_PAD), lambda b: (0, 0)),
            pl.BlockSpec((1, OUT_PAD), lambda b: (0, 0)),
        ],
        out_specs=pl.BlockSpec((T, BT, OUT_PAD), lambda b: (0, b, 0)),
        scratch_shapes=[
            pltpu.VMEM((T, BT, 8 * HIDDEN), jnp.float32),   # hoisted x@W_ih (+bias)
            pltpu.VMEM((T, BT, 2 * HIDDEN), jnp.float32),   # merged fwd|rev hidden states
        ],
    )

    kernel = pl.pallas_call(
        functools.partial(_lstmaa_kernel, T=T, BT=BT, compute_dtype=compute_dtype),
        out_shape=jax.ShapeDtypeStruct((T, Bp, OUT_PAD), jnp.float32),
        grid_spec=grid_spec,
        compiler_params=pltpu.CompilerParams(
            dimension_semantics=("parallel",),   # batch tiles are independent (megacore)
            vmem_limit_bytes=vmem_limit,
        ),
    )
    out3d = kernel(x_tm, params["wih"], params["whh"], params["b"],
                   params["wout"], params["bout"])
    out = out3d[:, :B, :OUT_DIM]                 # (T, B, 12)
    return jnp.transpose(out, (1, 0, 2))


def _split_gates(w):
    """Split torch gate-packed last axis [i, f, g, o] (each HIDDEN wide)."""
    H = HIDDEN
    return w[..., 0:H], w[..., H:2 * H], w[..., 2 * H:3 * H], w[..., 3 * H:4 * H]


def init_params(key):
    """Deterministic params with PyTorch-default-like uniform init (PyTorch shapes),
    then repacked for the kernel: right-matmul orientation and gate column order
    [i_f i_r | f_f f_r | o_f o_r | g_f g_r] (contiguous 64-lane gate blocks)."""
    H = HIDDEN
    k = 1.0 / jnp.sqrt(jnp.float32(H))
    keys = jax.random.split(key, 10)
    u = lambda kk, shape: jax.random.uniform(kk, shape, jnp.float32, -k, k)

    # PyTorch nn.LSTM parameter shapes, gate order [i, f, g, o]
    w_ih_f = u(keys[0], (4 * H, IN_DIM))
    w_hh_f = u(keys[1], (4 * H, H))
    b_ih_f = u(keys[2], (4 * H,))
    b_hh_f = u(keys[3], (4 * H,))
    w_ih_r = u(keys[4], (4 * H, IN_DIM))
    w_hh_r = u(keys[5], (4 * H, H))
    b_ih_r = u(keys[6], (4 * H,))
    b_hh_r = u(keys[7], (4 * H,))
    # nn.Linear(64, 12)
    kl = 1.0 / jnp.sqrt(jnp.float32(2 * H))
    w_lin = jax.random.uniform(keys[8], (OUT_DIM, 2 * H), jnp.float32, -kl, kl)
    b_lin = jax.random.uniform(keys[9], (OUT_DIM,), jnp.float32, -kl, kl)

    torch_like = dict(w_ih_f=w_ih_f, w_hh_f=w_hh_f, b_ih_f=b_ih_f, b_hh_f=b_hh_f,
                      w_ih_r=w_ih_r, w_hh_r=w_hh_r, b_ih_r=b_ih_r, b_hh_r=b_hh_r,
                      w_lin=w_lin, b_lin=b_lin)

    # ---- kernel layout (all repacking is one-time, zero runtime cost) ----------
    ii_f, fi_f, gi_f, oi_f = _split_gates(w_ih_f.T)   # (IN, H) each
    ii_r, fi_r, gi_r, oi_r = _split_gates(w_ih_r.T)
    wih = jnp.concatenate([ii_f, ii_r, fi_f, fi_r, oi_f, oi_r, gi_f, gi_r], axis=1)

    ih_f, fh_f, gh_f, oh_f = _split_gates(w_hh_f.T)   # (H, H) each
    ih_r, fh_r, gh_r, oh_r = _split_gates(w_hh_r.T)
    Z = jnp.zeros((H, H), jnp.float32)
    whh_top = jnp.concatenate([ih_f, Z, fh_f, Z, oh_f, Z, gh_f, Z], axis=1)   # h_fwd rows
    whh_bot = jnp.concatenate([Z, ih_r, Z, fh_r, Z, oh_r, Z, gh_r], axis=1)   # h_rev rows
    whh = jnp.concatenate([whh_top, whh_bot], axis=0)                          # (2H, 8H)

    bi_f, bf_f, bg_f, bo_f = _split_gates(b_ih_f + b_hh_f)
    bi_r, bf_r, bg_r, bo_r = _split_gates(b_ih_r + b_hh_r)
    b = jnp.concatenate([bi_f, bi_r, bf_f, bf_r, bo_f, bo_r, bg_f, bg_r])[None, :]

    wout = jnp.zeros((2 * H, OUT_PAD), jnp.float32).at[:, :OUT_DIM].set(w_lin.T)
    bout = jnp.zeros((1, OUT_PAD), jnp.float32).at[0, :OUT_DIM].set(b_lin)

    kernel_params = dict(wih=wih, whh=whh, b=b, wout=wout, bout=bout)
    return kernel_params, torch_like


def reference_forward(x, p):
    """Pure-JAX re-implementation of the PyTorch forward (zero initial state)."""
    B, T, _ = x.shape
    H = HIDDEN

    def run_dir(xs, w_ih, w_hh, b_ih, b_hh):
        def cell(carry, x_t):
            h, c = carry
            gates = x_t @ w_ih.T + b_ih + h @ w_hh.T + b_hh
            i = jax.nn.sigmoid(gates[:, 0 * H:1 * H])
            f = jax.nn.sigmoid(gates[:, 1 * H:2 * H])
            g = jnp.tanh(gates[:, 2 * H:3 * H])
            o = jax.nn.sigmoid(gates[:, 3 * H:4 * H])
            c_new = f * c + i * g
            h_new = o * jnp.tanh(c_new)
            return (h_new, c_new), h_new

        init = (jnp.zeros((B, H), jnp.float32), jnp.zeros((B, H), jnp.float32))
        _, hs = lax.scan(cell, init, jnp.transpose(xs, (1, 0, 2)))
        return jnp.transpose(hs, (1, 0, 2))   # (B, T, H)

    h_f = run_dir(x, p["w_ih_f"], p["w_hh_f"], p["b_ih_f"], p["b_hh_f"])
    h_b = run_dir(x[:, ::-1], p["w_ih_r"], p["w_hh_r"], p["b_ih_r"], p["b_hh_r"])[:, ::-1]
    lstm_out = jnp.concatenate([h_f, h_b], axis=-1)          # (B, T, 64)
    return lstm_out @ p["w_lin"].T + p["b_lin"]               # (B, T, 12)


if __name__ == "__main__":
    key = jax.random.PRNGKey(0)
    k_x, k_p = jax.random.split(key)

    B, T = 2, 8
    x = jax.random.normal(k_x, (B, T, IN_DIM), jnp.float32)

    kernel_params, torch_like = init_params(k_p)
    ref = reference_forward(x, torch_like)

    # f32 MXU path (validation path). Tolerance reflects the reference's default TPU
    # matmul precision vs. the kernel's f32 MXU path, not kernel error.
    out = jax.block_until_ready(lstmaa_forward(x, kernel_params))
    assert out.shape == (B, T, OUT_DIM), out.shape
    assert jnp.all(jnp.isfinite(out))
    assert jnp.allclose(out, ref, atol=2e-2, rtol=2e-2), float(jnp.max(jnp.abs(out - ref)))

    # bf16 MXU-operand path (recommended perf path on v6e/v7x); c and elementwise
    # math stay f32, so error through T=8 stays small — checked at a loose tolerance.
    out_bf = jax.block_until_ready(
        lstmaa_forward(x, kernel_params, compute_dtype=jnp.bfloat16))
    assert jnp.all(jnp.isfinite(out_bf))
    assert jnp.allclose(out_bf, ref, atol=1e-1, rtol=1e-1), float(jnp.max(jnp.abs(out_bf - ref)))

    print("KERNEL_OK")
</pallas_src>

<mosaic_0001>
module attributes {stable_mosaic.version = 11 : i64} {
  func.func @_lstmaa_kernel(%arg0: i32, %arg1: memref<8x8x20xf32, #tpu.memory_space<vmem>>, %arg2: memref<20x256xf32, #tpu.memory_space<vmem>>, %arg3: memref<64x256xf32, #tpu.memory_space<vmem>>, %arg4: memref<1x256xf32, #tpu.memory_space<vmem>>, %arg5: memref<64x128xf32, #tpu.memory_space<vmem>>, %arg6: memref<1x128xf32, #tpu.memory_space<vmem>>, %arg7: memref<8x8x128xf32, #tpu.memory_space<vmem>>, %arg8: memref<8x8x256xf32, #tpu.memory_space<vmem>>, %arg9: memref<8x8x64xf32, #tpu.memory_space<vmem>>) attributes {dimension_semantics = [#tpu.dimension_semantics<parallel>], iteration_bounds = array<i64: 1>, scalar_prefetch = 0 : i64, scratch_operands = 2 : i64, tpu.core_type = #tpu.core_type<tc>, window_params = [{transform_indices = @transform_0, window_bounds = array<i64: 8, 8, 20>}, {pipeline_mode = #tpu.pipeline_mode<synchronous>, transform_indices = @transform_1, window_bounds = array<i64: 20, 256>}, {pipeline_mode = #tpu.pipeline_mode<synchronous>, transform_indices = @transform_2, window_bounds = array<i64: 64, 256>}, {pipeline_mode = #tpu.pipeline_mode<synchronous>, transform_indices = @transform_3, window_bounds = array<i64: 1, 256>}, {pipeline_mode = #tpu.pipeline_mode<synchronous>, transform_indices = @transform_4, window_bounds = array<i64: 64, 128>}, {pipeline_mode = #tpu.pipeline_mode<synchronous>, transform_indices = @transform_5, window_bounds = array<i64: 1, 128>}, {transform_indices = @transform_6, window_bounds = array<i64: 8, 8, 128>}]} {
    %c0 = arith.constant 0 : index
    %c0_0 = arith.constant 0 : index
    %c0_1 = arith.constant 0 : index
    %0 = vector.load %arg1[%c0, %c0_0, %c0_1] : memref<8x8x20xf32, #tpu.memory_space<vmem>>, vector<8x8x20xf32>
    %1 = vector.shape_cast %0 : vector<8x8x20xf32> to vector<64x20xf32>
    %c0_2 = arith.constant 0 : index
    %c0_3 = arith.constant 0 : index
    %2 = vector.load %arg2[%c0_2, %c0_3] : memref<20x256xf32, #tpu.memory_space<vmem>>, vector<20x256xf32>
    %cst = arith.constant dense<0.000000e+00> : vector<64x256xf32>
    %3 = tpu.matmul %1, %2, %cst {dimension_numbers = #tpu.dot_dimension_numbers<[1], [0], [0], [1], [0, 0, 1, 1], [], []>} : vector<64x20xf32>, vector<20x256xf32>, vector<64x256xf32> -> vector<64x256xf32>
    %c0_4 = arith.constant 0 : index
    %c0_5 = arith.constant 0 : index
    %4 = vector.load %arg4[%c0_4, %c0_5] : memref<1x256xf32, #tpu.memory_space<vmem>>, vector<1x256xf32>
    %5 = vector.broadcast %4 : vector<1x256xf32> to vector<64x256xf32>
    %6 = arith.addf %3, %5 : vector<64x256xf32>
    %7 = vector.shape_cast %6 : vector<64x256xf32> to vector<8x8x256xf32>
    %c0_6 = arith.constant 0 : index
    %c0_7 = arith.constant 0 : index
    %c0_8 = arith.constant 0 : index
    %8 = vector.load %arg8[%c0_6, %c0_7, %c0_8] : memref<8x8x256xf32, #tpu.memory_space<vmem>>, vector<8x8x256xf32>
    tpu.vector_store %arg8[%c0_6, %c0_7, %c0_8], %7 {strides = array<i32>} : memref<8x8x256xf32, #tpu.memory_space<vmem>>, vector<8x8x256xf32>,
    %c0_9 = arith.constant 0 : index
    %c0_10 = arith.constant 0 : index
    %9 = vector.load %arg3[%c0_9, %c0_10] : memref<64x256xf32, #tpu.memory_space<vmem>>, vector<64x256xf32>
    %10 = tpu.iota {dimensions = array<i32: 1>} : vector<8x256xi32>
    %c64_i32 = arith.constant 64 : i32
    %c0_i32 = arith.constant 0 : i32
    %11 = arith.cmpi eq, %c64_i32, %c0_i32 : i32
    %c1_i32 = arith.constant 1 : i32
    %12 = arith.select %11, %c1_i32, %c64_i32 : i32
    %13 = vector.broadcast %12 : i32 to vector<8x256xi32>
    %14 = arith.remsi %10, %13 : vector<8x256xi32>
    %c0_i32_11 = arith.constant 0 : i32
    %15 = vector.broadcast %c0_i32_11 : i32 to vector<8x256xi32>
    %16 = arith.cmpi ne, %14, %15 : vector<8x256xi32>
    %c0_i32_12 = arith.constant 0 : i32
    %17 = vector.broadcast %c0_i32_12 : i32 to vector<8x256xi32>
    %18 = arith.cmpi slt, %14, %17 : vector<8x256xi32>
    %c0_i32_13 = arith.constant 0 : i32
    %19 = arith.cmpi slt, %12, %c0_i32_13 : i32
    %20 = vector.broadcast %19 : i1 to vector<8x256xi1>
    %21 = vector.broadcast %20 : vector<8x256xi1> to vector<8x256xi1>
    %22 = arith.xori %18, %21 : vector<8x256xi1>
    %23 = arith.andi %22, %16 : vector<8x256xi1>
    %24 = vector.broadcast %12 : i32 to vector<8x256xi32>
    %25 = arith.addi %14, %24 : vector<8x256xi32>
    %26 = arith.select %23, %25, %14 : vector<8x256xi1>, vector<8x256xi32>
    %c32_i32 = arith.constant 32 : i32
    %27 = vector.broadcast %c32_i32 : i32 to vector<8x256xi32>
    %28 = arith.cmpi slt, %26, %27 : vector<8x256xi32>
    %cst_14 = arith.constant 0.000000e+00 : f32
    %29 = vector.broadcast %cst_14 : f32 to vector<8x64xf32>
    %cst_15 = arith.constant 0.000000e+00 : f32
    %30 = vector.broadcast %cst_15 : f32 to vector<8x64xf32>
    %cst_16 = arith.constant dense<0.000000e+00> : vector<8x256xf32>
    %31 = tpu.matmul %29, %9, %cst_16 {dimension_numbers = #tpu.dot_dimension_numbers<[1], [0], [0], [1], [0, 0, 1, 1], [], []>} : vector<8x64xf32>, vector<64x256xf32>, vector<8x256xf32> -> vector<8x256xf32>
    %c0_17 = arith.constant 0 : index
    %c0_18 = arith.constant 0 : index
    %c0_19 = arith.constant 0 : index
    %32 = vector.load %arg8[%c0_17, %c0_18, %c0_19] : memref<8x8x256xf32, #tpu.memory_space<vmem>>, vector<1x8x256xf32>
    %33 = vector.shape_cast %32 : vector<1x8x256xf32> to vector<8x256xf32>
    %c7 = arith.constant 7 : index
    %c0_20 = arith.constant 0 : index
    %c0_21 = arith.constant 0 : index
    %34 = vector.load %arg8[%c7, %c0_20, %c0_21] : memref<8x8x256xf32, #tpu.memory_space<vmem>>, vector<1x8x256xf32>
    %35 = vector.shape_cast %34 : vector<1x8x256xf32> to vector<8x256xf32>
    %36 = arith.select %28, %33, %35 : vector<8x256xi1>, vector<8x256xf32>
    %37 = arith.addf %31, %36 : vector<8x256xf32>
    %38 = vector.extract_strided_slice %37 {offsets = [0, 0], sizes = [8, 192], strides = [1, 1]} : vector<8x256xf32> to vector<8x192xf32>
    %39 = arith.negf %38 : vector<8x192xf32>
    %40 = math.exp %39 : vector<8x192xf32>
    %cst_22 = arith.constant 1.000000e+00 : f32
    %41 = vector.broadcast %cst_22 : f32 to vector<8x192xf32>
    %42 = arith.addf %41, %40 : vector<8x192xf32>
    %43 = arith.divf %41, %42 : vector<8x192xf32>
    %44 = vector.extract_strided_slice %37 {offsets = [0, 192], sizes = [8, 64], strides = [1, 1]} : vector<8x256xf32> to vector<8x64xf32>
    %45 = math.tanh %44 : vector<8x64xf32>
    %46 = vector.extract_strided_slice %43 {offsets = [0, 0], sizes = [8, 64], strides = [1, 1]} : vector<8x192xf32> to vector<8x64xf32>
    %47 = vector.extract_strided_slice %43 {offsets = [0, 64], sizes = [8, 64], strides = [1, 1]} : vector<8x192xf32> to vector<8x64xf32>
    %48 = vector.extract_strided_slice %43 {offsets = [0, 128], sizes = [8, 64], strides = [1, 1]} : vector<8x192xf32> to vector<8x64xf32>
    %49 = arith.mulf %47, %30 : vector<8x64xf32>
    %50 = arith.mulf %46, %45 : vector<8x64xf32>
    %51 = arith.addf %49, %50 : vector<8x64xf32>
    %52 = math.tanh %51 : vector<8x64xf32>
    %53 = arith.mulf %48, %52 : vector<8x64xf32>
    %54 = vector.extract_strided_slice %53 {offsets = [0, 0], sizes = [8, 32], strides = [1, 1]} : vector<8x64xf32> to vector<8x32xf32>
    %c0_23 = arith.constant 0 : index
    %c0_24 = arith.constant 0 : index
    %c0_25 = arith.constant 0 : index
    %55 = vector.load %arg9[%c0_23, %c0_24, %c0_25] : memref<8x8x64xf32, #tpu.memory_space<vmem>>, vector<1x8x32xf32>
    %56 = vector.shape_cast %55 : vector<1x8x32xf32> to vector<8x32xf32>
    %57 = vector.shape_cast %54 : vector<8x32xf32> to vector<1x8x32xf32>
    tpu.vector_store %arg9[%c0_23, %c0_24, %c0_25], %57 {strides = array<i32>} : memref<8x8x64xf32, #tpu.memory_space<vmem>>, vector<1x8x32xf32>,
    %58 = vector.extract_strided_slice %53 {offsets = [0, 32], sizes = [8, 32], strides = [1, 1]} : vector<8x64xf32> to vector<8x32xf32>
    %c7_26 = arith.constant 7 : index
    %c0_27 = arith.constant 0 : index
    %c32 = arith.constant 32 : index
    %59 = vector.load %arg9[%c7_26, %c0_27, %c32] : memref<8x8x64xf32, #tpu.memory_space<vmem>>, vector<1x8x32xf32>
    %60 = vector.shape_cast %59 : vector<1x8x32xf32> to vector<8x32xf32>
    %61 = vector.shape_cast %58 : vector<8x32xf32> to vector<1x8x32xf32>
    tpu.vector_store %arg9[%c7_26, %c0_27, %c32], %61 {strides = array<i32>} : memref<8x8x64xf32, #tpu.memory_space<vmem>>, vector<1x8x32xf32>,
    %cst_28 = arith.constant dense<0.000000e+00> : vector<8x256xf32>
    %62 = tpu.matmul %53, %9, %cst_28 {dimension_numbers = #tpu.dot_dimension_numbers<[1], [0], [0], [1], [0, 0, 1, 1], [], []>} : vector<8x64xf32>, vector<64x256xf32>, vector<8x256xf32> -> vector<8x256xf32>
    %c1 = arith.constant 1 : index
    %c0_29 = arith.constant 0 : index
    %c0_30 = arith.constant 0 : index
    %63 = vector.load %arg8[%c1, %c0_29, %c0_30] : memref<8x8x256xf32, #tpu.memory_space<vmem>>, vector<1x8x256xf32>
    %64 = vector.shape_cast %63 : vector<1x8x256xf32> to vector<8x256xf32>
    %c6 = arith.constant 6 : index
    %c0_31 = arith.constant 0 : index
    %c0_32 = arith.constant 0 : index
    %65 = vector.load %arg8[%c6, %c0_31, %c0_32] : memref<8x8x256xf32, #tpu.memory_space<vmem>>, vector<1x8x256xf32>
    %66 = vector.shape_cast %65 : vector<1x8x256xf32> to vector<8x256xf32>
    %67 = arith.select %28, %64, %66 : vector<8x256xi1>, vector<8x256xf32>
    %68 = arith.addf %62, %67 : vector<8x256xf32>
    %69 = vector.extract_strided_slice %68 {offsets = [0, 0], sizes = [8, 192], strides = [1, 1]} : vector<8x256xf32> to vector<8x192xf32>
    %70 = arith.negf %69 : vector<8x192xf32>
    %71 = math.exp %70 : vector<8x192xf32>
    %cst_33 = arith.constant 1.000000e+00 : f32
    %72 = vector.broadcast %cst_33 : f32 to vector<8x192xf32>
    %73 = arith.addf %72, %71 : vector<8x192xf32>
    %74 = arith.divf %72, %73 : vector<8x192xf32>
    %75 = vector.extract_strided_slice %68 {offsets = [0, 192], sizes = [8, 64], strides = [1, 1]} : vector<8x256xf32> to vector<8x64xf32>
    %76 = math.tanh %75 : vector<8x64xf32>
    %77 = vector.extract_strided_slice %74 {offsets = [0, 0], sizes = [8, 64], strides = [1, 1]} : vector<8x192xf32> to vector<8x64xf32>
    %78 = vector.extract_strided_slice %74 {offsets = [0, 64], sizes = [8, 64], strides = [1, 1]} : vector<8x192xf32> to vector<8x64xf32>
    %79 = vector.extract_strided_slice %74 {offsets = [0, 128], sizes = [8, 64], strides = [1, 1]} : vector<8x192xf32> to vector<8x64xf32>
    %80 = arith.mulf %78, %51 : vector<8x64xf32>
    %81 = arith.mulf %77, %76 : vector<8x64xf32>
    %82 = arith.addf %80, %81 : vector<8x64xf32>
    %83 = math.tanh %82 : vector<8x64xf32>
    %84 = arith.mulf %79, %83 : vector<8x64xf32>
    %85 = vector.extract_strided_slice %84 {offsets = [0, 0], sizes = [8, 32], strides = [1, 1]} : vector<8x64xf32> to vector<8x32xf32>
    %c1_34 = arith.constant 1 : index
    %c0_35 = arith.constant 0 : index
    %c0_36 = arith.constant 0 : index
    %86 = vector.load %arg9[%c1_34, %c0_35, %c0_36] : memref<8x8x64xf32, #tpu.memory_space<vmem>>, vector<1x8x32xf32>
    %87 = vector.shape_cast %86 : vector<1x8x32xf32> to vector<8x32xf32>
    %88 = vector.shape_cast %85 : vector<8x32xf32> to vector<1x8x32xf32>
    tpu.vector_store %arg9[%c1_34, %c0_35, %c0_36], %88 {strides = array<i32>} : memref<8x8x64xf32, #tpu.memory_space<vmem>>, vector<1x8x32xf32>,
    %89 = vector.extract_strided_slice %84 {offsets = [0, 32], sizes = [8, 32], strides = [1, 1]} : vector<8x64xf32> to vector<8x32xf32>
    %c6_37 = arith.constant 6 : index
    %c0_38 = arith.constant 0 : index
    %c32_39 = arith.constant 32 : index
    %90 = vector.load %arg9[%c6_37, %c0_38, %c32_39] : memref<8x8x64xf32, #tpu.memory_space<vmem>>, vector<1x8x32xf32>
    %91 = vector.shape_cast %90 : vector<1x8x32xf32> to vector<8x32xf32>
    %92 = vector.shape_cast %89 : vector<8x32xf32> to vector<1x8x32xf32>
    tpu.vector_store %arg9[%c6_37, %c0_38, %c32_39], %92 {strides = array<i32>} : memref<8x8x64xf32, #tpu.memory_space<vmem>>, vector<1x8x32xf32>,
    %cst_40 = arith.constant dense<0.000000e+00> : vector<8x256xf32>
    %93 = tpu.matmul %84, %9, %cst_40 {dimension_numbers = #tpu.dot_dimension_numbers<[1], [0], [0], [1], [0, 0, 1, 1], [], []>} : vector<8x64xf32>, vector<64x256xf32>, vector<8x256xf32> -> vector<8x256xf32>
    %c2 = arith.constant 2 : index
    %c0_41 = arith.constant 0 : index
    %c0_42 = arith.constant 0 : index
    %94 = vector.load %arg8[%c2, %c0_41, %c0_42] : memref<8x8x256xf32, #tpu.memory_space<vmem>>, vector<1x8x256xf32>
    %95 = vector.shape_cast %94 : vector<1x8x256xf32> to vector<8x256xf32>
    %c5 = arith.constant 5 : index
    %c0_43 = arith.constant 0 : index
    %c0_44 = arith.constant 0 : index
    %96 = vector.load %arg8[%c5, %c0_43, %c0_44] : memref<8x8x256xf32, #tpu.memory_space<vmem>>, vector<1x8x256xf32>
    %97 = vector.shape_cast %96 : vector<1x8x256xf32> to vector<8x256xf32>
    %98 = arith.select %28, %95, %97 : vector<8x256xi1>, vector<8x256xf32>
    %99 = arith.addf %93, %98 : vector<8x256xf32>
    %100 = vector.extract_strided_slice %99 {offsets = [0, 0], sizes = [8, 192], strides = [1, 1]} : vector<8x256xf32> to vector<8x192xf32>
    %101 = arith.negf %100 : vector<8x192xf32>
    %102 = math.exp %101 : vector<8x192xf32>
    %cst_45 = arith.constant 1.000000e+00 : f32
    %103 = vector.broadcast %cst_45 : f32 to vector<8x192xf32>
    %104 = arith.addf %103, %102 : vector<8x192xf32>
    %105 = arith.divf %103, %104 : vector<8x192xf32>
    %106 = vector.extract_strided_slice %99 {offsets = [0, 192], sizes = [8, 64], strides = [1, 1]} : vector<8x256xf32> to vector<8x64xf32>
    %107 = math.tanh %106 : vector<8x64xf32>
    %108 = vector.extract_strided_slice %105 {offsets = [0, 0], sizes = [8, 64], strides = [1, 1]} : vector<8x192xf32> to vector<8x64xf32>
    %109 = vector.extract_strided_slice %105 {offsets = [0, 64], sizes = [8, 64], strides = [1, 1]} : vector<8x192xf32> to vector<8x64xf32>
    %110 = vector.extract_strided_slice %105 {offsets = [0, 128], sizes = [8, 64], strides = [1, 1]} : vector<8x192xf32> to vector<8x64xf32>
    %111 = arith.mulf %109, %82 : vector<8x64xf32>
    %112 = arith.mulf %108, %107 : vector<8x64xf32>
    %113 = arith.addf %111, %112 : vector<8x64xf32>
    %114 = math.tanh %113 : vector<8x64xf32>
    %115 = arith.mulf %110, %114 : vector<8x64xf32>
    %116 = vector.extract_strided_slice %115 {offsets = [0, 0], sizes = [8, 32], strides = [1, 1]} : vector<8x64xf32> to vector<8x32xf32>
    %c2_46 = arith.constant 2 : index
    %c0_47 = arith.constant 0 : index
    %c0_48 = arith.constant 0 : index
    %117 = vector.load %arg9[%c2_46, %c0_47, %c0_48] : memref<8x8x64xf32, #tpu.memory_space<vmem>>, vector<1x8x32xf32>
    %118 = vector.shape_cast %117 : vector<1x8x32xf32> to vector<8x32xf32>
    %119 = vector.shape_cast %116 : vector<8x32xf32> to vector<1x8x32xf32>
    tpu.vector_store %arg9[%c2_46, %c0_47, %c0_48], %119 {strides = array<i32>} : memref<8x8x64xf32, #tpu.memory_space<vmem>>, vector<1x8x32xf32>,
    %120 = vector.extract_strided_slice %115 {offsets = [0, 32], sizes = [8, 32], strides = [1, 1]} : vector<8x64xf32> to vector<8x32xf32>
    %c5_49 = arith.constant 5 : index
    %c0_50 = arith.constant 0 : index
    %c32_51 = arith.constant 32 : index
    %121 = vector.load %arg9[%c5_49, %c0_50, %c32_51] : memref<8x8x64xf32, #tpu.memory_space<vmem>>, vector<1x8x32xf32>
    %122 = vector.shape_cast %121 : vector<1x8x32xf32> to vector<8x32xf32>
    %123 = vector.shape_cast %120 : vector<8x32xf32> to vector<1x8x32xf32>
    tpu.vector_store %arg9[%c5_49, %c0_50, %c32_51], %123 {strides = array<i32>} : memref<8x8x64xf32, #tpu.memory_space<vmem>>, vector<1x8x32xf32>,
    %cst_52 = arith.constant dense<0.000000e+00> : vector<8x256xf32>
    %124 = tpu.matmul %115, %9, %cst_52 {dimension_numbers = #tpu.dot_dimension_numbers<[1], [0], [0], [1], [0, 0, 1, 1], [], []>} : vector<8x64xf32>, vector<64x256xf32>, vector<8x256xf32> -> vector<8x256xf32>
    %c3 = arith.constant 3 : index
    %c0_53 = arith.constant 0 : index
    %c0_54 = arith.constant 0 : index
    %125 = vector.load %arg8[%c3, %c0_53, %c0_54] : memref<8x8x256xf32, #tpu.memory_space<vmem>>, vector<1x8x256xf32>
    %126 = vector.shape_cast %125 : vector<1x8x256xf32> to vector<8x256xf32>
    %c4 = arith.constant 4 : index
    %c0_55 = arith.constant 0 : index
    %c0_56 = arith.constant 0 : index
    %127 = vector.load %arg8[%c4, %c0_55, %c0_56] : memref<8x8x256xf32, #tpu.memory_space<vmem>>, vector<1x8x256xf32>
    %128 = vector.shape_cast %127 : vector<1x8x256xf32> to vector<8x256xf32>
    %129 = arith.select %28, %126, %128 : vector<8x256xi1>, vector<8x256xf32>
    %130 = arith.addf %124, %129 : vector<8x256xf32>
    %131 = vector.extract_strided_slice %130 {offsets = [0, 0], sizes = [8, 192], strides = [1, 1]} : vector<8x256xf32> to vector<8x192xf32>
    %132 = arith.negf %131 : vector<8x192xf32>
    %133 = math.exp %132 : vector<8x192xf32>
    %cst_57 = arith.constant 1.000000e+00 : f32
    %134 = vector.broadcast %cst_57 : f32 to vector<8x192xf32>
    %135 = arith.addf %134, %133 : vector<8x192xf32>
    %136 = arith.divf %134, %135 : vector<8x192xf32>
    %137 = vector.extract_strided_slice %130 {offsets = [0, 192], sizes = [8, 64], strides = [1, 1]} : vector<8x256xf32> to vector<8x64xf32>
    %138 = math.tanh %137 : vector<8x64xf32>
    %139 = vector.extract_strided_slice %136 {offsets = [0, 0], sizes = [8, 64], strides = [1, 1]} : vector<8x192xf32> to vector<8x64xf32>
    %140 = vector.extract_strided_slice %136 {offsets = [0, 64], sizes = [8, 64], strides = [1, 1]} : vector<8x192xf32> to vector<8x64xf32>
    %141 = vector.extract_strided_slice %136 {offsets = [0, 128], sizes = [8, 64], strides = [1, 1]} : vector<8x192xf32> to vector<8x64xf32>
    %142 = arith.mulf %140, %113 : vector<8x64xf32>
    %143 = arith.mulf %139, %138 : vector<8x64xf32>
    %144 = arith.addf %142, %143 : vector<8x64xf32>
    %145 = math.tanh %144 : vector<8x64xf32>
    %146 = arith.mulf %141, %145 : vector<8x64xf32>
    %147 = vector.extract_strided_slice %146 {offsets = [0, 0], sizes = [8, 32], strides = [1, 1]} : vector<8x64xf32> to vector<8x32xf32>
    %c3_58 = arith.constant 3 : index
    %c0_59 = arith.constant 0 : index
    %c0_60 = arith.constant 0 : index
    %148 = vector.load %arg9[%c3_58, %c0_59, %c0_60] : memref<8x8x64xf32, #tpu.memory_space<vmem>>, vector<1x8x32xf32>
    %149 = vector.shape_cast %148 : vector<1x8x32xf32> to vector<8x32xf32>
    %150 = vector.shape_cast %147 : vector<8x32xf32> to vector<1x8x32xf32>
    tpu.vector_store %arg9[%c3_58, %c0_59, %c0_60], %150 {strides = array<i32>} : memref<8x8x64xf32, #tpu.memory_space<vmem>>, vector<1x8x32xf32>,
    %151 = vector.extract_strided_slice %146 {offsets = [0, 32], sizes = [8, 32], strides = [1, 1]} : vector<8x64xf32> to vector<8x32xf32>
    %c4_61 = arith.constant 4 : index
    %c0_62 = arith.constant 0 : index
    %c32_63 = arith.constant 32 : index
    %152 = vector.load %arg9[%c4_61, %c0_62, %c32_63] : memref<8x8x64xf32, #tpu.memory_space<vmem>>, vector<1x8x32xf32>
    %153 = vector.shape_cast %152 : vector<1x8x32xf32> to vector<8x32xf32>
    %154 = vector.shape_cast %151 : vector<8x32xf32> to vector<1x8x32xf32>
    tpu.vector_store %arg9[%c4_61, %c0_62, %c32_63], %154 {strides = array<i32>} : memref<8x8x64xf32, #tpu.memory_space<vmem>>, vector<1x8x32xf32>,
    %cst_64 = arith.constant dense<0.000000e+00> : vector<8x256xf32>
    %155 = tpu.matmul %146, %9, %cst_64 {dimension_numbers = #tpu.dot_dimension_numbers<[1], [0], [0], [1], [0, 0, 1, 1], [], []>} : vector<8x64xf32>, vector<64x256xf32>, vector<8x256xf32> -> vector<8x256xf32>
    %c4_65 = arith.constant 4 : index
    %c0_66 = arith.constant 0 : index
    %c0_67 = arith.constant 0 : index
    %156 = vector.load %arg8[%c4_65, %c0_66, %c0_67] : memref<8x8x256xf32, #tpu.memory_space<vmem>>, vector<1x8x256xf32>
    %157 = vector.shape_cast %156 : vector<1x8x256xf32> to vector<8x256xf32>
    %c3_68 = arith.constant 3 : index
    %c0_69 = arith.constant 0 : index
    %c0_70 = arith.constant 0 : index
    %158 = vector.load %arg8[%c3_68, %c0_69, %c0_70] : memref<8x8x256xf32, #tpu.memory_space<vmem>>, vector<1x8x256xf32>
    %159 = vector.shape_cast %158 : vector<1x8x256xf32> to vector<8x256xf32>
    %160 = arith.select %28, %157, %159 : vector<8x256xi1>, vector<8x256xf32>
    %161 = arith.addf %155, %160 : vector<8x256xf32>
    %162 = vector.extract_strided_slice %161 {offsets = [0, 0], sizes = [8, 192], strides = [1, 1]} : vector<8x256xf32> to vector<8x192xf32>
    %163 = arith.negf %162 : vector<8x192xf32>
    %164 = math.exp %163 : vector<8x192xf32>
    %cst_71 = arith.constant 1.000000e+00 : f32
    %165 = vector.broadcast %cst_71 : f32 to vector<8x192xf32>
    %166 = arith.addf %165, %164 : vector<8x192xf32>
    %167 = arith.divf %165, %166 : vector<8x192xf32>
    %168 = vector.extract_strided_slice %161 {offsets = [0, 192], sizes = [8, 64], strides = [1, 1]} : vector<8x256xf32> to vector<8x64xf32>
    %169 = math.tanh %168 : vector<8x64xf32>
    %170 = vector.extract_strided_slice %167 {offsets = [0, 0], sizes = [8, 64], strides = [1, 1]} : vector<8x192xf32> to vector<8x64xf32>
    %171 = vector.extract_strided_slice %167 {offsets = [0, 64], sizes = [8, 64], strides = [1, 1]} : vector<8x192xf32> to vector<8x64xf32>
    %172 = vector.extract_strided_slice %167 {offsets = [0, 128], sizes = [8, 64], strides = [1, 1]} : vector<8x192xf32> to vector<8x64xf32>
    %173 = arith.mulf %171, %144 : vector<8x64xf32>
    %174 = arith.mulf %170, %169 : vector<8x64xf32>
    %175 = arith.addf %173, %174 : vector<8x64xf32>
    %176 = math.tanh %175 : vector<8x64xf32>
    %177 = arith.mulf %172, %176 : vector<8x64xf32>
    %178 = vector.extract_strided_slice %177 {offsets = [0, 0], sizes = [8, 32], strides = [1, 1]} : vector<8x64xf32> to vector<8x32xf32>
    %c4_72 = arith.constant 4 : index
    %c0_73 = arith.constant 0 : index
    %c0_74 = arith.constant 0 : index
    %179 = vector.load %arg9[%c4_72, %c0_73, %c0_74] : memref<8x8x64xf32, #tpu.memory_space<vmem>>, vector<1x8x32xf32>
    %180 = vector.shape_cast %179 : vector<1x8x32xf32> to vector<8x32xf32>
    %181 = vector.shape_cast %178 : vector<8x32xf32> to vector<1x8x32xf32>
    tpu.vector_store %arg9[%c4_72, %c0_73, %c0_74], %181 {strides = array<i32>} : memref<8x8x64xf32, #tpu.memory_space<vmem>>, vector<1x8x32xf32>,
    %182 = vector.extract_strided_slice %177 {offsets = [0, 32], sizes = [8, 32], strides = [1, 1]} : vector<8x64xf32> to vector<8x32xf32>
    %c3_75 = arith.constant 3 : index
    %c0_76 = arith.constant 0 : index
    %c32_77 = arith.constant 32 : index
    %183 = vector.load %arg9[%c3_75, %c0_76, %c32_77] : memref<8x8x64xf32, #tpu.memory_space<vmem>>, vector<1x8x32xf32>
    %184 = vector.shape_cast %183 : vector<1x8x32xf32> to vector<8x32xf32>
    %185 = vector.shape_cast %182 : vector<8x32xf32> to vector<1x8x32xf32>
    tpu.vector_store %arg9[%c3_75, %c0_76, %c32_77], %185 {strides = array<i32>} : memref<8x8x64xf32, #tpu.memory_space<vmem>>, vector<1x8x32xf32>,
    %cst_78 = arith.constant dense<0.000000e+00> : vector<8x256xf32>
    %186 = tpu.matmul %177, %9, %cst_78 {dimension_numbers = #tpu.dot_dimension_numbers<[1], [0], [0], [1], [0, 0, 1, 1], [], []>} : vector<8x64xf32>, vector<64x256xf32>, vector<8x256xf32> -> vector<8x256xf32>
    %c5_79 = arith.constant 5 : index
    %c0_80 = arith.constant 0 : index
    %c0_81 = arith.constant 0 : index
    %187 = vector.load %arg8[%c5_79, %c0_80, %c0_81] : memref<8x8x256xf32, #tpu.memory_space<vmem>>, vector<1x8x256xf32>
    %188 = vector.shape_cast %187 : vector<1x8x256xf32> to vector<8x256xf32>
    %c2_82 = arith.constant 2 : index
    %c0_83 = arith.constant 0 : index
    %c0_84 = arith.constant 0 : index
    %189 = vector.load %arg8[%c2_82, %c0_83, %c0_84] : memref<8x8x256xf32, #tpu.memory_space<vmem>>, vector<1x8x256xf32>
    %190 = vector.shape_cast %189 : vector<1x8x256xf32> to vector<8x256xf32>
    %191 = arith.select %28, %188, %190 : vector<8x256xi1>, vector<8x256xf32>
    %192 = arith.addf %186, %191 : vector<8x256xf32>
    %193 = vector.extract_strided_slice %192 {offsets = [0, 0], sizes = [8, 192], strides = [1, 1]} : vector<8x256xf32> to vector<8x192xf32>
    %194 = arith.negf %193 : vector<8x192xf32>
    %195 = math.exp %194 : vector<8x192xf32>
    %cst_85 = arith.constant 1.000000e+00 : f32
    %196 = vector.broadcast %cst_85 : f32 to vector<8x192xf32>
    %197 = arith.addf %196, %195 : vector<8x192xf32>
    %198 = arith.divf %196, %197 : vector<8x192xf32>
    %199 = vector.extract_strided_slice %192 {offsets = [0, 192], sizes = [8, 64], strides = [1, 1]} : vector<8x256xf32> to vector<8x64xf32>
    %200 = math.tanh %199 : vector<8x64xf32>
    %201 = vector.extract_strided_slice %198 {offsets = [0, 0], sizes = [8, 64], strides = [1, 1]} : vector<8x192xf32> to vector<8x64xf32>
    %202 = vector.extract_strided_slice %198 {offsets = [0, 64], sizes = [8, 64], strides = [1, 1]} : vector<8x192xf32> to vector<8x64xf32>
    %203 = vector.extract_strided_slice %198 {offsets = [0, 128], sizes = [8, 64], strides = [1, 1]} : vector<8x192xf32> to vector<8x64xf32>
    %204 = arith.mulf %202, %175 : vector<8x64xf32>
    %205 = arith.mulf %201, %200 : vector<8x64xf32>
    %206 = arith.addf %204, %205 : vector<8x64xf32>
    %207 = math.tanh %206 : vector<8x64xf32>
    %208 = arith.mulf %203, %207 : vector<8x64xf32>
    %209 = vector.extract_strided_slice %208 {offsets = [0, 0], sizes = [8, 32], strides = [1, 1]} : vector<8x64xf32> to vector<8x32xf32>
    %c5_86 = arith.constant 5 : index
    %c0_87 = arith.constant 0 : index
    %c0_88 = arith.constant 0 : index
    %210 = vector.load %arg9[%c5_86, %c0_87, %c0_88] : memref<8x8x64xf32, #tpu.memory_space<vmem>>, vector<1x8x32xf32>
    %211 = vector.shape_cast %210 : vector<1x8x32xf32> to vector<8x32xf32>
    %212 = vector.shape_cast %209 : vector<8x32xf32> to vector<1x8x32xf32>
    tpu.vector_store %arg9[%c5_86, %c0_87, %c0_88], %212 {strides = array<i32>} : memref<8x8x64xf32, #tpu.memory_space<vmem>>, vector<1x8x32xf32>,
    %213 = vector.extract_strided_slice %208 {offsets = [0, 32], sizes = [8, 32], strides = [1, 1]} : vector<8x64xf32> to vector<8x32xf32>
    %c2_89 = arith.constant 2 : index
    %c0_90 = arith.constant 0 : index
    %c32_91 = arith.constant 32 : index
    %214 = vector.load %arg9[%c2_89, %c0_90, %c32_91] : memref<8x8x64xf32, #tpu.memory_space<vmem>>, vector<1x8x32xf32>
    %215 = vector.shape_cast %214 : vector<1x8x32xf32> to vector<8x32xf32>
    %216 = vector.shape_cast %213 : vector<8x32xf32> to vector<1x8x32xf32>
    tpu.vector_store %arg9[%c2_89, %c0_90, %c32_91], %216 {strides = array<i32>} : memref<8x8x64xf32, #tpu.memory_space<vmem>>, vector<1x8x32xf32>,
    %cst_92 = arith.constant dense<0.000000e+00> : vector<8x256xf32>
    %217 = tpu.matmul %208, %9, %cst_92 {dimension_numbers = #tpu.dot_dimension_numbers<[1], [0], [0], [1], [0, 0, 1, 1], [], []>} : vector<8x64xf32>, vector<64x256xf32>, vector<8x256xf32> -> vector<8x256xf32>
    %c6_93 = arith.constant 6 : index
    %c0_94 = arith.constant 0 : index
    %c0_95 = arith.constant 0 : index
    %218 = vector.load %arg8[%c6_93, %c0_94, %c0_95] : memref<8x8x256xf32, #tpu.memory_space<vmem>>, vector<1x8x256xf32>
    %219 = vector.shape_cast %218 : vector<1x8x256xf32> to vector<8x256xf32>
    %c1_96 = arith.constant 1 : index
    %c0_97 = arith.constant 0 : index
    %c0_98 = arith.constant 0 : index
    %220 = vector.load %arg8[%c1_96, %c0_97, %c0_98] : memref<8x8x256xf32, #tpu.memory_space<vmem>>, vector<1x8x256xf32>
    %221 = vector.shape_cast %220 : vector<1x8x256xf32> to vector<8x256xf32>
    %222 = arith.select %28, %219, %221 : vector<8x256xi1>, vector<8x256xf32>
    %223 = arith.addf %217, %222 : vector<8x256xf32>
    %224 = vector.extract_strided_slice %223 {offsets = [0, 0], sizes = [8, 192], strides = [1, 1]} : vector<8x256xf32> to vector<8x192xf32>
    %225 = arith.negf %224 : vector<8x192xf32>
    %226 = math.exp %225 : vector<8x192xf32>
    %cst_99 = arith.constant 1.000000e+00 : f32
    %227 = vector.broadcast %cst_99 : f32 to vector<8x192xf32>
    %228 = arith.addf %227, %226 : vector<8x192xf32>
    %229 = arith.divf %227, %228 : vector<8x192xf32>
    %230 = vector.extract_strided_slice %223 {offsets = [0, 192], sizes = [8, 64], strides = [1, 1]} : vector<8x256xf32> to vector<8x64xf32>
    %231 = math.tanh %230 : vector<8x64xf32>
    %232 = vector.extract_strided_slice %229 {offsets = [0, 0], sizes = [8, 64], strides = [1, 1]} : vector<8x192xf32> to vector<8x64xf32>
    %233 = vector.extract_strided_slice %229 {offsets = [0, 64], sizes = [8, 64], strides = [1, 1]} : vector<8x192xf32> to vector<8x64xf32>
    %234 = vector.extract_strided_slice %229 {offsets = [0, 128], sizes = [8, 64], strides = [1, 1]} : vector<8x192xf32> to vector<8x64xf32>
    %235 = arith.mulf %233, %206 : vector<8x64xf32>
    %236 = arith.mulf %232, %231 : vector<8x64xf32>
    %237 = arith.addf %235, %236 : vector<8x64xf32>
    %238 = math.tanh %237 : vector<8x64xf32>
    %239 = arith.mulf %234, %238 : vector<8x64xf32>
    %240 = vector.extract_strided_slice %239 {offsets = [0, 0], sizes = [8, 32], strides = [1, 1]} : vector<8x64xf32> to vector<8x32xf32>
    %c6_100 = arith.constant 6 : index
    %c0_101 = arith.constant 0 : index
    %c0_102 = arith.constant 0 : index
    %241 = vector.load %arg9[%c6_100, %c0_101, %c0_102] : memref<8x8x64xf32, #tpu.memory_space<vmem>>, vector<1x8x32xf32>
    %242 = vector.shape_cast %241 : vector<1x8x32xf32> to vector<8x32xf32>
    %243 = vector.shape_cast %240 : vector<8x32xf32> to vector<1x8x32xf32>
    tpu.vector_store %arg9[%c6_100, %c0_101, %c0_102], %243 {strides = array<i32>} : memref<8x8x64xf32, #tpu.memory_space<vmem>>, vector<1x8x32xf32>,
    %244 = vector.extract_strided_slice %239 {offsets = [0, 32], sizes = [8, 32], strides = [1, 1]} : vector<8x64xf32> to vector<8x32xf32>
    %c1_103 = arith.constant 1 : index
    %c0_104 = arith.constant 0 : index
    %c32_105 = arith.constant 32 : index
    %245 = vector.load %arg9[%c1_103, %c0_104, %c32_105] : memref<8x8x64xf32, #tpu.memory_space<vmem>>, vector<1x8x32xf32>
    %246 = vector.shape_cast %245 : vector<1x8x32xf32> to vector<8x32xf32>
    %247 = vector.shape_cast %244 : vector<8x32xf32> to vector<1x8x32xf32>
    tpu.vector_store %arg9[%c1_103, %c0_104, %c32_105], %247 {strides = array<i32>} : memref<8x8x64xf32, #tpu.memory_space<vmem>>, vector<1x8x32xf32>,
    %cst_106 = arith.constant dense<0.000000e+00> : vector<8x256xf32>
    %248 = tpu.matmul %239, %9, %cst_106 {dimension_numbers = #tpu.dot_dimension_numbers<[1], [0], [0], [1], [0, 0, 1, 1], [], []>} : vector<8x64xf32>, vector<64x256xf32>, vector<8x256xf32> -> vector<8x256xf32>
    %c7_107 = arith.constant 7 : index
    %c0_108 = arith.constant 0 : index
    %c0_109 = arith.constant 0 : index
    %249 = vector.load %arg8[%c7_107, %c0_108, %c0_109] : memref<8x8x256xf32, #tpu.memory_space<vmem>>, vector<1x8x256xf32>
    %250 = vector.shape_cast %249 : vector<1x8x256xf32> to vector<8x256xf32>
    %c0_110 = arith.constant 0 : index
    %c0_111 = arith.constant 0 : index
    %c0_112 = arith.constant 0 : index
    %251 = vector.load %arg8[%c0_110, %c0_111, %c0_112] : memref<8x8x256xf32, #tpu.memory_space<vmem>>, vector<1x8x256xf32>
    %252 = vector.shape_cast %251 : vector<1x8x256xf32> to vector<8x256xf32>
    %253 = arith.select %28, %250, %252 : vector<8x256xi1>, vector<8x256xf32>
    %254 = arith.addf %248, %253 : vector<8x256xf32>
    %255 = vector.extract_strided_slice %254 {offsets = [0, 0], sizes = [8, 192], strides = [1, 1]} : vector<8x256xf32> to vector<8x192xf32>
    %256 = arith.negf %255 : vector<8x192xf32>
    %257 = math.exp %256 : vector<8x192xf32>
    %cst_113 = arith.constant 1.000000e+00 : f32
    %258 = vector.broadcast %cst_113 : f32 to vector<8x192xf32>
    %259 = arith.addf %258, %257 : vector<8x192xf32>
    %260 = arith.divf %258, %259 : vector<8x192xf32>
    %261 = vector.extract_strided_slice %254 {offsets = [0, 192], sizes = [8, 64], strides = [1, 1]} : vector<8x256xf32> to vector<8x64xf32>
    %262 = math.tanh %261 : vector<8x64xf32>
    %263 = vector.extract_strided_slice %260 {offsets = [0, 0], sizes = [8, 64], strides = [1, 1]} : vector<8x192xf32> to vector<8x64xf32>
    %264 = vector.extract_strided_slice %260 {offsets = [0, 64], sizes = [8, 64], strides = [1, 1]} : vector<8x192xf32> to vector<8x64xf32>
    %265 = vector.extract_strided_slice %260 {offsets = [0, 128], sizes = [8, 64], strides = [1, 1]} : vector<8x192xf32> to vector<8x64xf32>
    %266 = arith.mulf %264, %237 : vector<8x64xf32>
    %267 = arith.mulf %263, %262 : vector<8x64xf32>
    %268 = arith.addf %266, %267 : vector<8x64xf32>
    %269 = math.tanh %268 : vector<8x64xf32>
    %270 = arith.mulf %265, %269 : vector<8x64xf32>
    %271 = vector.extract_strided_slice %270 {offsets = [0, 0], sizes = [8, 32], strides = [1, 1]} : vector<8x64xf32> to vector<8x32xf32>
    %c7_114 = arith.constant 7 : index
    %c0_115 = arith.constant 0 : index
    %c0_116 = arith.constant 0 : index
    %272 = vector.load %arg9[%c7_114, %c0_115, %c0_116] : memref<8x8x64xf32, #tpu.memory_space<vmem>>, vector<1x8x32xf32>
    %273 = vector.shape_cast %272 : vector<1x8x32xf32> to vector<8x32xf32>
    %274 = vector.shape_cast %271 : vector<8x32xf32> to vector<1x8x32xf32>
    tpu.vector_store %arg9[%c7_114, %c0_115, %c0_116], %274 {strides = array<i32>} : memref<8x8x64xf32, #tpu.memory_space<vmem>>, vector<1x8x32xf32>,
    %275 = vector.extract_strided_slice %270 {offsets = [0, 32], sizes = [8, 32], strides = [1, 1]} : vector<8x64xf32> to vector<8x32xf32>
    %c0_117 = arith.constant 0 : index
    %c0_118 = arith.constant 0 : index
    %c32_119 = arith.constant 32 : index
    %276 = vector.load %arg9[%c0_117, %c0_118, %c32_119] : memref<8x8x64xf32, #tpu.memory_space<vmem>>, vector<1x8x32xf32>
    %277 = vector.shape_cast %276 : vector<1x8x32xf32> to vector<8x32xf32>
    %278 = vector.shape_cast %275 : vector<8x32xf32> to vector<1x8x32xf32>
    tpu.vector_store %arg9[%c0_117, %c0_118, %c32_119], %278 {strides = array<i32>} : memref<8x8x64xf32, #tpu.memory_space<vmem>>, vector<1x8x32xf32>,
    %c0_120 = arith.constant 0 : index
    %c0_121 = arith.constant 0 : index
    %c0_122 = arith.constant 0 : index
    %279 = vector.load %arg9[%c0_120, %c0_121, %c0_122] : memref<8x8x64xf32, #tpu.memory_space<vmem>>, vector<8x8x64xf32>
    %280 = vector.shape_cast %279 : vector<8x8x64xf32> to vector<64x64xf32>
    %c0_123 = arith.constant 0 : index
    %c0_124 = arith.constant 0 : index
    %281 = vector.load %arg5[%c0_123, %c0_124] : memref<64x128xf32, #tpu.memory_space<vmem>>, vector<64x128xf32>
    %cst_125 = arith.constant dense<0.000000e+00> : vector<64x128xf32>
    %282 = tpu.matmul %280, %281, %cst_125 {dimension_numbers = #tpu.dot_dimension_numbers<[1], [0], [0], [1], [0, 0, 1, 1], [], []>} : vector<64x64xf32>, vector<64x128xf32>, vector<64x128xf32> -> vector<64x128xf32>
    %c0_126 = arith.constant 0 : index
    %c0_127 = arith.constant 0 : index
    %283 = vector.load %arg6[%c0_126, %c0_127] : memref<1x128xf32, #tpu.memory_space<vmem>>, vector<1x128xf32>
    %284 = vector.broadcast %283 : vector<1x128xf32> to vector<64x128xf32>
    %285 = arith.addf %282, %284 : vector<64x128xf32>
    %286 = vector.shape_cast %285 : vector<64x128xf32> to vector<8x8x128xf32>
    %c0_128 = arith.constant 0 : index
    %c0_129 = arith.constant 0 : index
    %c0_130 = arith.constant 0 : index
    %287 = vector.load %arg7[%c0_128, %c0_129, %c0_130] : memref<8x8x128xf32, #tpu.memory_space<vmem>>, vector<8x8x128xf32>
    tpu.vector_store %arg7[%c0_128, %c0_129, %c0_130], %286 {strides = array<i32>} : memref<8x8x128xf32, #tpu.memory_space<vmem>>, vector<8x8x128xf32>,
    return
  }
  func.func @transform_0(%arg0: i32) -> (i32, i32, i32) {
    %c0_i32 = arith.constant 0 : i32
    %c0_i32_0 = arith.constant 0 : i32
    %c0_i32_1 = arith.constant 0 : i32
    return %c0_i32, %arg0, %c0_i32_0 : i32, i32, i32
  }
  func.func @transform_1(%arg0: i32) -> (i32, i32) {
    %c0_i32 = arith.constant 0 : i32
    %c0_i32_0 = arith.constant 0 : i32
    %c0_i32_1 = arith.constant 0 : i32
    return %c0_i32, %c0_i32_0 : i32, i32
  }
  func.func @transform_2(%arg0: i32) -> (i32, i32) {
    %c0_i32 = arith.constant 0 : i32
    %c0_i32_0 = arith.constant 0 : i32
    %c0_i32_1 = arith.constant 0 : i32
    return %c0_i32, %c0_i32_0 : i32, i32
  }
  func.func @transform_3(%arg0: i32) -> (i32, i32) {
    %c0_i32 = arith.constant 0 : i32
    %c0_i32_0 = arith.constant 0 : i32
    %c0_i32_1 = arith.constant 0 : i32
    return %c0_i32, %c0_i32_0 : i32, i32
  }
  func.func @transform_4(%arg0: i32) -> (i32, i32) {
    %c0_i32 = arith.constant 0 : i32
    %c0_i32_0 = arith.constant 0 : i32
    %c0_i32_1 = arith.constant 0 : i32
    return %c0_i32, %c0_i32_0 : i32, i32
  }
  func.func @transform_5(%arg0: i32) -> (i32, i32) {
    %c0_i32 = arith.constant 0 : i32
    %c0_i32_0 = arith.constant 0 : i32
    %c0_i32_1 = arith.constant 0 : i32
    return %c0_i32, %c0_i32_0 : i32, i32
  }
  func.func @transform_6(%arg0: i32) -> (i32, i32, i32) {
    %c0_i32 = arith.constant 0 : i32
    %c0_i32_0 = arith.constant 0 : i32
    %c0_i32_1 = arith.constant 0 : i32
    return %c0_i32, %arg0, %c0_i32_0 : i32, i32, i32
  }
}

</mosaic_0001>

<llo_original>
// kernel: tpu_custom_call.1
$region0: #{tpu_custom_call.1}
  #allocation0 [shape = 'u32[]', space=smem, size = 0x4, offset = 0x4, fixed_abs, tag = 'smem constant byte address 0x4 - core index']
  #allocation1 [shape = 'u32[72,128]{1,0:T(1,128)}', space=vmem, size = 0x9000, scoped, tag = 'internal scratch']
  #allocation2 [shape = 'f32[8,8,256]{2,1,0:T(8,128)}', space=vmem, size = 0x10000, scoped, tag = 'scratch operand']
  #allocation3 [shape = 'f32[8,8,64]{2,1,0:T(8,128)}', space=vmem, size = 0x8000, scoped, tag = 'scratch operand']
  %s0 = inlined_call_operand.hbm [shape: f32[8,8,20], index: 0, kind: input, shape index: {}]
  %s1 = inlined_call_operand.hbm [shape: f32[20,256], index: 1, kind: input, shape index: {}]
  %s2 = inlined_call_operand.hbm [shape: f32[64,256], index: 2, kind: input, shape index: {}]
  %s3 = inlined_call_operand.vmem [shape: f32[1,256], index: 3, kind: input, shape index: {}]
  %s4 = inlined_call_operand.hbm [shape: f32[64,128], index: 4, kind: input, shape index: {}]
  %s5 = inlined_call_operand.vmem [shape: f32[1,128], index: 5, kind: input, shape index: {}]
  %s6 = inlined_call_operand.hbm [shape: f32[8,8,128], index: 6, kind: output, shape index: {}]
  %s7 = sld [smem:[#allocation0]]
  $region50: #{tpu_custom_call.1} parent=0
    _
  %s9 = ssub.s32 1, %s7
  %s10 = scalar_select 0, %s9, %s7
  $region1: #{tpu_custom_call.1} parent=0
    #allocation4 [shape = 'u8[32768]{0}', space=vmem, size = 0x8000, scoped, tag = 'input window, operand 0, single buffered']
    #allocation5 [shape = 's32[1]{0}', space=sflag, size = 0x4, scoped, tag = 'scoped memory for tpu_custom_call.1']
    #allocation6 [shape = 's32[1]{0}', space=sflag, size = 0x4, scoped, tag = 'scoped memory for tpu_custom_call.1']
    #allocation7 [shape = 'u8[24576]{0}', space=vmem, size = 0x6000, scoped, tag = 'input window, operand 1, single buffered']
    #allocation8 [shape = 's32[1]{0}', space=sflag, size = 0x4, scoped, tag = 'scoped memory for tpu_custom_call.1']
    #allocation9 [shape = 'u8[65536]{0}', space=vmem, size = 0x10000, scoped, tag = 'input window, operand 2, single buffered']
    #allocation10 [shape = 'u8[32768]{0}', space=vmem, size = 0x8000, scoped, tag = 'input window, operand 4, single buffered']
    #allocation11 [shape = 's32[1]{0}', space=sflag, size = 0x4, scoped, tag = 'scoped memory for tpu_custom_call.1']
    #allocation12 [shape = 'u8[32768]{0}', space=vmem, size = 0x8000, scoped, tag = 'output window, operand 0, single buffered']
    %11 = vsyncpa [#allocation5], 0
    %12 = vsyncpa [#allocation8], 0
    %13 = vsyncpa [#allocation11], 0
    %14 = vsyncpa [#allocation6], 0
    // Predicated region
    $region2: #{tpu_custom_call.1} parent=1 // pred_check
      _
    $region3: #{tpu_custom_call.1} parent=1 // pred_check_branch
      %16 = sbr.rel (0) target = $region5
    $region4: #{tpu_custom_call.1} parent=1 // pred_region
      %18 = vsyncadd [#allocation5], 0
      %s19 = sshll.u32 %s0, 4
      %s20 = int_to_ptr.hbm [resolvable:$true] %s19
      %s21 = sshll.u32 [#allocation4], 4
      %s22 = int_to_ptr.vmem [resolvable:$true] %s21
      %27 = dma.hbm_to_vmem [thread:$0]  %s20, 1024, %s22, [#allocation5], 128, 128, 8
    $region5: #{tpu_custom_call.1} parent=1 // pred_fallthru
      _
    // Predicated region
    $region6: #{tpu_custom_call.1} parent=1 // pred_check
      _
    $region7: #{tpu_custom_call.1} parent=1 // pred_check_branch
      %29 = sbr.rel (0) target = $region9
    $region8: #{tpu_custom_call.1} parent=1 // pred_region
      %31 = vsyncadd [#allocation8], 0
      %s32 = sshll.u32 %s1, 4
      %s33 = int_to_ptr.hbm [resolvable:$true] %s32
      %s34 = sshll.u32 [#allocation7], 4
      %s35 = int_to_ptr.vmem [resolvable:$true] %s34
      %40 = dma.hbm_to_vmem [thread:$0]  %s33, 768, %s35, [#allocation8], 256, 256, 16
    $region9: #{tpu_custom_call.1} parent=1 // pred_fallthru
      _
    // Predicated region
    $region10: #{tpu_custom_call.1} parent=1 // pred_check
      _
    $region11: #{tpu_custom_call.1} parent=1 // pred_check_branch
      %42 = sbr.rel (0) target = $region13
    $region12: #{tpu_custom_call.1} parent=1 // pred_region
      %44 = vsyncadd [#allocation8], 0
      %s45 = sshll.u32 %s2, 4
      %s46 = int_to_ptr.hbm [resolvable:$true] %s45
      %s47 = sshll.u32 [#allocation9], 4
      %s48 = int_to_ptr.vmem [resolvable:$true] %s47
      %53 = dma.hbm_to_vmem [thread:$0]  %s46, 2048, %s48, [#allocation8], 256, 256, 16
    $region13: #{tpu_custom_call.1} parent=1 // pred_fallthru
      _
    // Predicated region
    $region14: #{tpu_custom_call.1} parent=1 // pred_check
      _
    $region15: #{tpu_custom_call.1} parent=1 // pred_check_branch
      %55 = sbr.rel (0) target = $region17
    $region16: #{tpu_custom_call.1} parent=1 // pred_region
      _
    $region17: #{tpu_custom_call.1} parent=1 // pred_fallthru
      _
    // Predicated region
    $region18: #{tpu_custom_call.1} parent=1 // pred_check
      _
    $region19: #{tpu_custom_call.1} parent=1 // pred_check_branch
      %57 = sbr.rel (0) target = $region21
    $region20: #{tpu_custom_call.1} parent=1 // pred_region
      %59 = vsyncadd [#allocation11], 0
      %s60 = sshll.u32 %s4, 4
      %s61 = int_to_ptr.hbm [resolvable:$true] %s60
      %s62 = sshll.u32 [#allocation10], 4
      %s63 = int_to_ptr.vmem [resolvable:$true] %s62
      %68 = dma.hbm_to_vmem [thread:$0]  %s61, 1024, %s63, [#allocation11], 128, 128, 8
    $region21: #{tpu_custom_call.1} parent=1 // pred_fallthru
      _
    // Predicated region
    $region22: #{tpu_custom_call.1} parent=1 // pred_check
      _
    $region23: #{tpu_custom_call.1} parent=1 // pred_check_branch
      %70 = sbr.rel (0) target = $region25
    $region24: #{tpu_custom_call.1} parent=1 // pred_region
      _
    $region25: #{tpu_custom_call.1} parent=1 // pred_fallthru
      _
    // Predicated region
    $region26: #{tpu_custom_call.1} parent=1 // pred_check
      _
    $region27: #{tpu_custom_call.1} parent=1 // pred_check_branch
      %72 = sbr.rel (0) target = $region29
    $region28: #{tpu_custom_call.1} parent=1 // pred_region
      %74 = dma.done [#allocation5], 1024
    $region29: #{tpu_custom_call.1} parent=1 // pred_fallthru
      _
    // Predicated region
    $region30: #{tpu_custom_call.1} parent=1 // pred_check
      _
    $region31: #{tpu_custom_call.1} parent=1 // pred_check_branch
      %76 = sbr.rel (0) target = $region33
    $region32: #{tpu_custom_call.1} parent=1 // pred_region
      %78 = dma.done [#allocation8], 768
    $region33: #{tpu_custom_call.1} parent=1 // pred_fallthru
      _
    // Predicated region
    $region34: #{tpu_custom_call.1} parent=1 // pred_check
      _
    $region35: #{tpu_custom_call.1} parent=1 // pred_check_branch
      %80 = sbr.rel (0) target = $region37
    $region36: #{tpu_custom_call.1} parent=1 // pred_region
      %82 = dma.done [#allocation8], 2048
    $region37: #{tpu_custom_call.1} parent=1 // pred_fallthru
      _
    // Predicated region
    $region38: #{tpu_custom_call.1} parent=1 // pred_check
      _
    $region39: #{tpu_custom_call.1} parent=1 // pred_check_branch
      %84 = sbr.rel (0) target = $region41
    $region40: #{tpu_custom_call.1} parent=1 // pred_region
      %86 = dma.done [#allocation11], 1024
    $region41: #{tpu_custom_call.1} parent=1 // pred_fallthru
      _
    %v87 = vld [vmem:[#allocation4] sm:$0xff]
    %v88 = vld [vmem:[#allocation4 + $0x8] sm:$0xff]
    %v89 = vld [vmem:[#allocation4 + $0x10] sm:$0xff]
    %v90 = vld [vmem:[#allocation4 + $0x18] sm:$0xff]
    %v91 = vld [vmem:[#allocation4 + $0x20] sm:$0xff]
    %v92 = vld [vmem:[#allocation4 + $0x28] sm:$0xff]
    %v93 = vld [vmem:[#allocation4 + $0x30] sm:$0xff]
    %v94 = vld [vmem:[#allocation4 + $0x38] sm:$0xff]
    %v95 = vld [vmem:[#allocation7] sm:$0xff]
    %v96 = vld [vmem:[#allocation7 + $0x8] sm:$0xff]
    %v97 = vld [vmem:[#allocation7 + $0x10] sm:$0xff]
    %v98 = vld [vmem:[#allocation7 + $0x18] sm:$0xff]
    %v99 = vld [vmem:[#allocation7 + $0x20] sm:$0xf]
    %v100 = vld [vmem:[#allocation7 + $0x28] sm:$0xf]
    %v101 = vld [vmem:[%s3] sm:$0x3]
    %v103 = vperm.slane %v101, 0
    %v104 = vperm.slane %v101, 1
    %vm107 = vcmask 162816
    %v109 = vsel %vm107, %v87, 0
    %v112 = vsel %vm107, %v88, 0
    %v115 = vsel %vm107, %v89, 0
    %v118 = vsel %vm107, %v90, 0
    %v121 = vsel %vm107, %v91, 0
    %v124 = vsel %vm107, %v92, 0
    %v127 = vsel %vm107, %v93, 0
    %v130 = vsel %vm107, %v94, 0
    %vm132 = vcmask 1043456
    %v134 = vsel %vm132, %v99, 0
    %v137 = vsel %vm132, %v100, 0
    %139 = vmatpush.msra.mxu0 0.0
    %140 = vmatpush.msra.mxu0 0.0
    %141 = vmatpush.msra.mxu0 0.0
    %142 = vmatpush.msra.mxu0 0.0
    %143 = vmatpush.msra.mxu0 0.0
    %144 = vmatpush.msra.mxu0 0.0
    %145 = vmatpush.msra.mxu0 0.0
    %146 = vmatpush.msra.mxu0 0.0
    %147 = vmatpush.msra.mxu0 0.0
    %148 = vmatpush.msra.mxu0 0.0
    %149 = vmatpush.msra.mxu0 0.0
    %150 = vmatpush.msra.mxu0 0.0
    %151 = vmatpush.msra.mxu0 0.0
    %152 = vmatpush.msra.mxu0 %v134
    %153 = vmatpush.msra.mxu0 %v97
    %154 = vmatpush.msra.mxu0 %v95
    %155 = vmatmul.f32.gmra.mxu0 %v109
    %v156 = vpop.f32.mrf.mxu0
    %v157 = vadd.f32 %v103, %v156
    %158 = vmatmul.f32.gmra.mxu0 %v112
    %v159 = vpop.f32.mrf.mxu0
    %v160 = vadd.f32 %v103, %v159
    %161 = vmatmul.f32.gmra.mxu0 %v115
    %v162 = vpop.f32.mrf.mxu0
    %v163 = vadd.f32 %v103, %v162
    %164 = vmatmul.f32.gmra.mxu0 %v118
    %v165 = vpop.f32.mrf.mxu0
    %v166 = vadd.f32 %v103, %v165
    %167 = vmatmul.f32.gmra.mxu0 %v121
    %v168 = vpop.f32.mrf.mxu0
    %v169 = vadd.f32 %v103, %v168
    %170 = vmatmul.f32.gmra.mxu0 %v124
    %v171 = vpop.f32.mrf.mxu0
    %v172 = vadd.f32 %v103, %v171
    %173 = vmatmul.f32.gmra.mxu0 %v127
    %v174 = vpop.f32.mrf.mxu0
    %v175 = vadd.f32 %v103, %v174
    %176 = vmatmul.f32.gmra.mxu0 %v130
    %v177 = vpop.f32.mrf.mxu0
    %v178 = vadd.f32 %v103, %v177
    %179 = vdwg.mxu0
    %180 = vmatpush.msra.mxu0 0.0
    %181 = vmatpush.msra.mxu0 0.0
    %182 = vmatpush.msra.mxu0 0.0
    %183 = vmatpush.msra.mxu0 0.0
    %184 = vmatpush.msra.mxu0 0.0
    %185 = vmatpush.msra.mxu0 0.0
    %186 = vmatpush.msra.mxu0 0.0
    %187 = vmatpush.msra.mxu0 0.0
    %188 = vmatpush.msra.mxu0 0.0
    %189 = vmatpush.msra.mxu0 0.0
    %190 = vmatpush.msra.mxu0 0.0
    %191 = vmatpush.msra.mxu0 0.0
    %192 = vmatpush.msra.mxu0 0.0
    %193 = vmatpush.msra.mxu0 %v137
    %194 = vmatpush.msra.mxu0 %v98
    %195 = vmatpush.msra.mxu0 %v96
    %196 = vmatmul.f32.gmra.mxu0 %v109
    %v197 = vpop.f32.mrf.mxu0
    %v198 = vadd.f32 %v104, %v197
    %199 = vmatmul.f32.gmra.mxu0 %v112
    %v200 = vpop.f32.mrf.mxu0
    %v201 = vadd.f32 %v104, %v200
    %202 = vmatmul.f32.gmra.mxu0 %v115
    %v203 = vpop.f32.mrf.mxu0
    %v204 = vadd.f32 %v104, %v203
    %205 = vmatmul.f32.gmra.mxu0 %v118
    %v206 = vpop.f32.mrf.mxu0
    %v207 = vadd.f32 %v104, %v206
    %208 = vmatmul.f32.gmra.mxu0 %v121
    %v209 = vpop.f32.mrf.mxu0
    %v210 = vadd.f32 %v104, %v209
    %211 = vmatmul.f32.gmra.mxu0 %v124
    %v212 = vpop.f32.mrf.mxu0
    %v213 = vadd.f32 %v104, %v212
    %214 = vmatmul.f32.gmra.mxu0 %v127
    %v215 = vpop.f32.mrf.mxu0
    %v216 = vadd.f32 %v104, %v215
    %217 = vmatmul.f32.gmra.mxu0 %v130
    %v218 = vpop.f32.mrf.mxu0
    %v219 = vadd.f32 %v104, %v218
    %220 = vdwg.mxu0
    %221 = vst [vmem:[#allocation2] sm:$0xff] %v157
    %222 = vst [vmem:[#allocation2 + $0x8] sm:$0xff] %v198
    %223 = vst [vmem:[#allocation2 + $0x10] sm:$0xff] %v160
    %224 = vst [vmem:[#allocation2 + $0x18] sm:$0xff] %v201
    %225 = vst [vmem:[#allocation2 + $0x20] sm:$0xff] %v163
    %226 = vst [vmem:[#allocation2 + $0x28] sm:$0xff] %v204
    %227 = vst [vmem:[#allocation2 + $0x30] sm:$0xff] %v166
    %228 = vst [vmem:[#allocation2 + $0x38] sm:$0xff] %v207
    %229 = vst [vmem:[#allocation2 + $0x40] sm:$0xff] %v169
    %230 = vst [vmem:[#allocation2 + $0x48] sm:$0xff] %v210
    %231 = vst [vmem:[#allocation2 + $0x50] sm:$0xff] %v172
    %232 = vst [vmem:[#allocation2 + $0x58] sm:$0xff] %v213
    %233 = vst [vmem:[#allocation2 + $0x60] sm:$0xff] %v175
    %234 = vst [vmem:[#allocation2 + $0x68] sm:$0xff] %v216
    %235 = vst [vmem:[#allocation2 + $0x70] sm:$0xff] %v178
    %236 = vst [vmem:[#allocation2 + $0x78] sm:$0xff] %v219
    %v237 = vld [vmem:[#allocation9] sm:$0xff]
    %v238 = vld [vmem:[#allocation9 + $0x8] sm:$0xff]
    %v239 = vld [vmem:[#allocation9 + $0x10] sm:$0xff]
    %v240 = vld [vmem:[#allocation9 + $0x18] sm:$0xff]
    %v241 = vld [vmem:[#allocation9 + $0x20] sm:$0xff]
    %v242 = vld [vmem:[#allocation9 + $0x28] sm:$0xff]
    %v243 = vld [vmem:[#allocation9 + $0x30] sm:$0xff]
    %v244 = vld [vmem:[#allocation9 + $0x38] sm:$0xff]
    %v245 = vld [vmem:[#allocation9 + $0x40] sm:$0xff]
    %v246 = vld [vmem:[#allocation9 + $0x48] sm:$0xff]
    %v247 = vld [vmem:[#allocation9 + $0x50] sm:$0xff]
    %v248 = vld [vmem:[#allocation9 + $0x58] sm:$0xff]
    %v249 = vld [vmem:[#allocation9 + $0x60] sm:$0xff]
    %v250 = vld [vmem:[#allocation9 + $0x68] sm:$0xff]
    %v251 = vld [vmem:[#allocation9 + $0x70] sm:$0xff]
    %v252 = vld [vmem:[#allocation9 + $0x78] sm:$0xff]
    %v253 = vlaneseq
    %v254 = vand.u32 %v253, 127
    %v255 = vadd.s32 %v254, 128
    %vm256 = vcmp.lt.s32.totalorder %v254, 0
    %v257 = vsub.s32 0, %v254
    %v258 = vsel %vm256, %v257, %v254
    %v259 = vshrl.u32 %v258, 6
    %v260 = vand.u32 %v258, 63
    %v261 = vsub.s32 0, %v260
    %v262 = vsel %vm256, %v261, %v260
    %vm263 = vcmp.lt.s32.totalorder %v255, 0
    %v264 = vsub.s32 0, %v255
    %v265 = vsel %vm263, %v264, %v255
    %v266 = vshrl.u32 %v265, 6
    %v267 = vand.u32 %v265, 63
    %v268 = vsub.s32 0, %v267
    %v269 = vsel %vm263, %v268, %v267
    %vm270 = vcmp.ne.s32.totalorder %v262, 0
    %vm271 = vcmp.ne.s32.totalorder %v269, 0
    %vm272 = vcmp.lt.s32.totalorder %v262, 0
    %vm273 = vcmp.lt.s32.totalorder %v269, 0
    %vm274 = vmand %vm272, %vm270
    %vm275 = vmand %vm273, %vm271
    %v276 = vadd.s32 %v262, 64
    %v277 = vadd.s32 %v269, 64
    %v278 = vsel %vm274, %v276, %v262
    %v279 = vsel %vm275, %v277, %v269
    %vm280 = vcmp.lt.s32.totalorder %v278, 32
    %vm281 = vcmp.lt.s32.totalorder %v279, 32
    %v282 = vld [vmem:[#allocation2] sm:$0xff]
    %v283 = vld [vmem:[#allocation2 + $0x8] sm:$0xff]
    %s284 = scalar_lea.vmem [#allocation2], 112
    %v285 = vld [vmem:[%s284] sm:$0xff]
    %v286 = vld [vmem:[%s284 + $0x8] sm:$0xff]
    %v287 = vsel %vm280, %v282, %v285
    %v288 = vsel %vm281, %v283, %v286
    %vm289 = vcmask 523264
    %v291 = vsel %vm289, 0.0, 0
    %293 = vmatpush.msra.mxu0 0.0
    %294 = vmatpush.msra.mxu0 0.0
    %295 = vmatpush.msra.mxu0 0.0
    %296 = vmatpush.msra.mxu0 0.0
    %297 = vmatpush.msra.mxu0 0.0
    %298 = vmatpush.msra.mxu0 0.0
    %299 = vmatpush.msra.mxu0 0.0
    %300 = vmatpush.msra.mxu0 0.0
    %301 = vmatpush.msra.mxu0 %v251
    %302 = vmatpush.msra.mxu0 %v249
    %303 = vmatpush.msra.mxu0 %v247
    %304 = vmatpush.msra.mxu0 %v245
    %305 = vmatpush.msra.mxu0 %v243
    %306 = vmatpush.msra.mxu0 %v241
    %307 = vmatpush.msra.mxu0 %v239
    %308 = vmatpush.msra.mxu0 %v237
    %309 = vmatmul.f32.gmra.mxu0 %v291
    %v310 = vpop.f32.mrf.mxu0
    %v311 = vadd.f32 %v287, %v310
    %312 = vdwg.mxu0
    %313 = vmatpush.msra.mxu0 0.0
    %314 = vmatpush.msra.mxu0 0.0
    %315 = vmatpush.msra.mxu0 0.0
    %316 = vmatpush.msra.mxu0 0.0
    %317 = vmatpush.msra.mxu0 0.0
    %318 = vmatpush.msra.mxu0 0.0
    %319 = vmatpush.msra.mxu0 0.0
    %320 = vmatpush.msra.mxu0 0.0
    %321 = vmatpush.msra.mxu0 %v252
    %322 = vmatpush.msra.mxu0 %v250
    %323 = vmatpush.msra.mxu0 %v248
    %324 = vmatpush.msra.mxu0 %v246
    %325 = vmatpush.msra.mxu0 %v244
    %326 = vmatpush.msra.mxu0 %v242
    %327 = vmatpush.msra.mxu0 %v240
    %328 = vmatpush.msra.mxu0 %v238
    %329 = vmatmul.f32.gmra.mxu0 %v291
    %v330 = vpop.f32.mrf.mxu0
    %v331 = vadd.f32 %v288, %v330
    %332 = vdwg.mxu0
    %v333 = vxor.u32 %v311, 2147483648
    %v334 = vxor.u32 %v331, 2147483648
    %v335 = vmul.f32 %v333, 1.442695
    %v336 = vpow.pop %v335
    %v337 = vmul.f32 %v334, 1.442695
    %v338 = vpow.pop %v337
    %v339 = vadd.f32 %v336, 1.0
    %v340 = vadd.f32 %v338, 1.0
    %v341 = vrcp.pop %v339
    %v342 = vmul.f32 %v339, %v341
    %v343 = vsub.f32 1.0, %v342
    %v344 = vmul.f32 %v341, %v343
    %v345 = vadd.f32 %v341, %v344
    %vm346 = vweird.f32 %v339
    %vm347 = vweird.f32 %v341
    %vm348 = vmor %vm346, %vm347
    %v349 = vsel %vm348, %v341, %v345
    %v350 = vand.u32 2147483647, %v339
    %vm351 = vcmp.eq.f32.partialorder %v350, 8.507059e+37
    %v352 = vand.u32 %v339, 2147483648
    %v353 = vor.u32 1.1754944e-38, %v352
    %v354 = vsel %vm351, %v353, %v349
    %v355 = vmul.f32 1.0, %v354
    %v356 = vrcp.pop %v340
    %v357 = vmul.f32 %v340, %v356
    %v358 = vsub.f32 1.0, %v357
    %v359 = vmul.f32 %v356, %v358
    %v360 = vadd.f32 %v356, %v359
    %vm361 = vweird.f32 %v340
    %vm362 = vweird.f32 %v356
    %vm363 = vmor %vm361, %vm362
    %v364 = vsel %vm363, %v356, %v360
    %v365 = vand.u32 2147483647, %v340
    %vm366 = vcmp.eq.f32.partialorder %v365, 8.507059e+37
    %v367 = vand.u32 %v340, 2147483648
    %v368 = vor.u32 1.1754944e-38, %v367
    %v369 = vsel %vm366, %v368, %v364
    %v370 = vmul.f32 1.0, %v369
    %v371 = vtanh.pop %v331
    %v372 = vmul.f32 %v355, 0.0
    %374 = vrot.lane.b32.xlu0 %v371, 64
    %v375 = vpop.permute.xlu0 %374
    %v377 = vmul.f32 %v355, %v375
    %379 = vrot.lane.b32.xlu0 %v377, 64
    %v380 = vpop.permute.xlu0 %379
    %v382 = vadd.f32 %v372, %v380
    %v383 = vtanh.pop %v382
    %385 = vrot.lane.b32.xlu0 %v383, 64
    %v386 = vpop.permute.xlu0 %385
    %v388 = vmul.f32 %v370, %v386
    %vm389 = vcmask 261120
    %390 = vst.msk [vmem:[#allocation3] sm:$0xff] %vm389, %v388
    %s391 = scalar_lea.vmem [#allocation3], 56
    %vm392 = vcmask 523520
    %393 = vst.msk [vmem:[%s391] sm:$0xff] %vm392, %v388
    %s394 = scalar_lea.vmem [#allocation2], 16
    %v395 = vld [vmem:[%s394] sm:$0xff]
    %v396 = vld [vmem:[%s394 + $0x8] sm:$0xff]
    %s397 = scalar_lea.vmem [#allocation2], 96
    %v398 = vld [vmem:[%s397] sm:$0xff]
    %v399 = vld [vmem:[%s397 + $0x8] sm:$0xff]
    %v400 = vsel %vm280, %v395, %v398
    %v401 = vsel %vm281, %v396, %v399
    %v403 = vsel %vm289, %v388, 0
    %405 = vmatpush.msra.mxu0 0.0
    %406 = vmatpush.msra.mxu0 0.0
    %407 = vmatpush.msra.mxu0 0.0
    %408 = vmatpush.msra.mxu0 0.0
    %409 = vmatpush.msra.mxu0 0.0
    %410 = vmatpush.msra.mxu0 0.0
    %411 = vmatpush.msra.mxu0 0.0
    %412 = vmatpush.msra.mxu0 0.0
    %413 = vmatpush.msra.mxu0 %v251
    %414 = vmatpush.msra.mxu0 %v249
    %415 = vmatpush.msra.mxu0 %v247
    %416 = vmatpush.msra.mxu0 %v245
    %417 = vmatpush.msra.mxu0 %v243
    %418 = vmatpush.msra.mxu0 %v241
    %419 = vmatpush.msra.mxu0 %v239
    %420 = vmatpush.msra.mxu0 %v237
    %421 = vmatmul.f32.gmra.mxu0 %v403
    %v422 = vpop.f32.mrf.mxu0
    %v423 = vadd.f32 %v400, %v422
    %424 = vdwg.mxu0
    %425 = vmatpush.msra.mxu0 0.0
    %426 = vmatpush.msra.mxu0 0.0
    %427 = vmatpush.msra.mxu0 0.0
    %428 = vmatpush.msra.mxu0 0.0
    %429 = vmatpush.msra.mxu0 0.0
    %430 = vmatpush.msra.mxu0 0.0
    %431 = vmatpush.msra.mxu0 0.0
    %432 = vmatpush.msra.mxu0 0.0
    %433 = vmatpush.msra.mxu0 %v252
    %434 = vmatpush.msra.mxu0 %v250
    %435 = vmatpush.msra.mxu0 %v248
    %436 = vmatpush.msra.mxu0 %v246
    %437 = vmatpush.msra.mxu0 %v244
    %438 = vmatpush.msra.mxu0 %v242
    %439 = vmatpush.msra.mxu0 %v240
    %440 = vmatpush.msra.mxu0 %v238
    %441 = vmatmul.f32.gmra.mxu0 %v403
    %v442 = vpop.f32.mrf.mxu0
    %v443 = vadd.f32 %v401, %v442
    %444 = vdwg.mxu0
    %v445 = vxor.u32 %v423, 2147483648
    %v446 = vxor.u32 %v443, 2147483648
    %v447 = vmul.f32 %v445, 1.442695
    %v448 = vpow.pop %v447
    %v449 = vmul.f32 %v446, 1.442695
    %v450 = vpow.pop %v449
    %v451 = vadd.f32 %v448, 1.0
    %v452 = vadd.f32 %v450, 1.0
    %v453 = vrcp.pop %v451
    %v454 = vmul.f32 %v451, %v453
    %v455 = vsub.f32 1.0, %v454
    %v456 = vmul.f32 %v453, %v455
    %v457 = vadd.f32 %v453, %v456
    %vm458 = vweird.f32 %v451
    %vm459 = vweird.f32 %v453
    %vm460 = vmor %vm458, %vm459
    %v461 = vsel %vm460, %v453, %v457
    %v462 = vand.u32 2147483647, %v451
    %vm463 = vcmp.eq.f32.partialorder %v462, 8.507059e+37
    %v464 = vand.u32 %v451, 2147483648
    %v465 = vor.u32 1.1754944e-38, %v464
    %v466 = vsel %vm463, %v465, %v461
    %v467 = vmul.f32 1.0, %v466
    %v468 = vrcp.pop %v452
    %v469 = vmul.f32 %v452, %v468
    %v470 = vsub.f32 1.0, %v469
    %v471 = vmul.f32 %v468, %v470
    %v472 = vadd.f32 %v468, %v471
    %vm473 = vweird.f32 %v452
    %vm474 = vweird.f32 %v468
    %vm475 = vmor %vm473, %vm474
    %v476 = vsel %vm475, %v468, %v472
    %v477 = vand.u32 2147483647, %v452
    %vm478 = vcmp.eq.f32.partialorder %v477, 8.507059e+37
    %v479 = vand.u32 %v452, 2147483648
    %v480 = vor.u32 1.1754944e-38, %v479
    %v481 = vsel %vm478, %v480, %v476
    %v482 = vmul.f32 1.0, %v481
    %v483 = vtanh.pop %v443
    %v484 = vmul.f32 %v467, %v382
    %486 = vrot.lane.b32.xlu0 %v483, 64
    %v487 = vpop.permute.xlu0 %486
    %v489 = vmul.f32 %v467, %v487
    %491 = vrot.lane.b32.xlu0 %v489, 64
    %v492 = vpop.permute.xlu0 %491
    %v494 = vadd.f32 %v484, %v492
    %v495 = vtanh.pop %v494
    %497 = vrot.lane.b32.xlu0 %v495, 64
    %v498 = vpop.permute.xlu0 %497
    %v500 = vmul.f32 %v482, %v498
    %s501 = scalar_lea.vmem [#allocation3], 8
    %502 = vst.msk [vmem:[%s501] sm:$0xff] %vm389, %v500
    %s503 = scalar_lea.vmem [#allocation3], 48
    %504 = vst.msk [vmem:[%s503] sm:$0xff] %vm392, %v500
    %s505 = scalar_lea.vmem [#allocation2], 32
    %v506 = vld [vmem:[%s505] sm:$0xff]
    %v507 = vld [vmem:[%s505 + $0x8] sm:$0xff]
    %s508 = scalar_lea.vmem [#allocation2], 80
    %v509 = vld [vmem:[%s508] sm:$0xff]
    %v510 = vld [vmem:[%s508 + $0x8] sm:$0xff]
    %v511 = vsel %vm280, %v506, %v509
    %v512 = vsel %vm281, %v507, %v510
    %v514 = vsel %vm289, %v500, 0
    %516 = vmatpush.msra.mxu0 0.0
    %517 = vmatpush.msra.mxu0 0.0
    %518 = vmatpush.msra.mxu0 0.0
    %519 = vmatpush.msra.mxu0 0.0
    %520 = vmatpush.msra.mxu0 0.0
    %521 = vmatpush.msra.mxu0 0.0
    %522 = vmatpush.msra.mxu0 0.0
    %523 = vmatpush.msra.mxu0 0.0
    %524 = vmatpush.msra.mxu0 %v251
    %525 = vmatpush.msra.mxu0 %v249
    %526 = vmatpush.msra.mxu0 %v247
    %527 = vmatpush.msra.mxu0 %v245
    %528 = vmatpush.msra.mxu0 %v243
    %529 = vmatpush.msra.mxu0 %v241
    %530 = vmatpush.msra.mxu0 %v239
    %531 = vmatpush.msra.mxu0 %v237
    %532 = vmatmul.f32.gmra.mxu0 %v514
    %v533 = vpop.f32.mrf.mxu0
    %v534 = vadd.f32 %v511, %v533
    %535 = vdwg.mxu0
    %536 = vmatpush.msra.mxu0 0.0
    %537 = vmatpush.msra.mxu0 0.0
    %538 = vmatpush.msra.mxu0 0.0
    %539 = vmatpush.msra.mxu0 0.0
    %540 = vmatpush.msra.mxu0 0.0
    %541 = vmatpush.msra.mxu0 0.0
    %542 = vmatpush.msra.mxu0 0.0
    %543 = vmatpush.msra.mxu0 0.0
    %544 = vmatpush.msra.mxu0 %v252
    %545 = vmatpush.msra.mxu0 %v250
    %546 = vmatpush.msra.mxu0 %v248
    %547 = vmatpush.msra.mxu0 %v246
    %548 = vmatpush.msra.mxu0 %v244
    %549 = vmatpush.msra.mxu0 %v242
    %550 = vmatpush.msra.mxu0 %v240
    %551 = vmatpush.msra.mxu0 %v238
    %552 = vmatmul.f32.gmra.mxu0 %v514
    %v553 = vpop.f32.mrf.mxu0
    %v554 = vadd.f32 %v512, %v553
    %555 = vdwg.mxu0
    %v556 = vxor.u32 %v534, 2147483648
    %v557 = vxor.u32 %v554, 2147483648
    %v558 = vmul.f32 %v556, 1.442695
    %v559 = vpow.pop %v558
    %v560 = vmul.f32 %v557, 1.442695
    %v561 = vpow.pop %v560
    %v562 = vadd.f32 %v559, 1.0
    %v563 = vadd.f32 %v561, 1.0
    %v564 = vrcp.pop %v562
    %v565 = vmul.f32 %v562, %v564
    %v566 = vsub.f32 1.0, %v565
    %v567 = vmul.f32 %v564, %v566
    %v568 = vadd.f32 %v564, %v567
    %vm569 = vweird.f32 %v562
    %vm570 = vweird.f32 %v564
    %vm571 = vmor %vm569, %vm570
    %v572 = vsel %vm571, %v564, %v568
    %v573 = vand.u32 2147483647, %v562
    %vm574 = vcmp.eq.f32.partialorder %v573, 8.507059e+37
    %v575 = vand.u32 %v562, 2147483648
    %v576 = vor.u32 1.1754944e-38, %v575
    %v577 = vsel %vm574, %v576, %v572
    %v578 = vmul.f32 1.0, %v577
    %v579 = vrcp.pop %v563
    %v580 = vmul.f32 %v563, %v579
    %v581 = vsub.f32 1.0, %v580
    %v582 = vmul.f32 %v579, %v581
    %v583 = vadd.f32 %v579, %v582
    %vm584 = vweird.f32 %v563
    %vm585 = vweird.f32 %v579
    %vm586 = vmor %vm584, %vm585
    %v587 = vsel %vm586, %v579, %v583
    %v588 = vand.u32 2147483647, %v563
    %vm589 = vcmp.eq.f32.partialorder %v588, 8.507059e+37
    %v590 = vand.u32 %v563, 2147483648
    %v591 = vor.u32 1.1754944e-38, %v590
    %v592 = vsel %vm589, %v591, %v587
    %v593 = vmul.f32 1.0, %v592
    %v594 = vtanh.pop %v554
    %v595 = vmul.f32 %v578, %v494
    %597 = vrot.lane.b32.xlu0 %v594, 64
    %v598 = vpop.permute.xlu0 %597
    %v600 = vmul.f32 %v578, %v598
    %602 = vrot.lane.b32.xlu0 %v600, 64
    %v603 = vpop.permute.xlu0 %602
    %v605 = vadd.f32 %v595, %v603
    %v606 = vtanh.pop %v605
    %608 = vrot.lane.b32.xlu0 %v606, 64
    %v609 = vpop.permute.xlu0 %608
    %v611 = vmul.f32 %v593, %v609
    %s612 = scalar_lea.vmem [#allocation3], 16
    %613 = vst.msk [vmem:[%s612] sm:$0xff] %vm389, %v611
    %s614 = scalar_lea.vmem [#allocation3], 40
    %615 = vst.msk [vmem:[%s614] sm:$0xff] %vm392, %v611
    %s616 = scalar_lea.vmem [#allocation2], 48
    %v617 = vld [vmem:[%s616] sm:$0xff]
    %v618 = vld [vmem:[%s616 + $0x8] sm:$0xff]
    %s619 = scalar_lea.vmem [#allocation2], 64
    %v620 = vld [vmem:[%s619] sm:$0xff]
    %v621 = vld [vmem:[%s619 + $0x8] sm:$0xff]
    %v622 = vsel %vm280, %v617, %v620
    %v623 = vsel %vm281, %v618, %v621
    %v625 = vsel %vm289, %v611, 0
    %627 = vmatpush.msra.mxu0 0.0
    %628 = vmatpush.msra.mxu0 0.0
    %629 = vmatpush.msra.mxu0 0.0
    %630 = vmatpush.msra.mxu0 0.0
    %631 = vmatpush.msra.mxu0 0.0
    %632 = vmatpush.msra.mxu0 0.0
    %633 = vmatpush.msra.mxu0 0.0
    %634 = vmatpush.msra.mxu0 0.0
    %635 = vmatpush.msra.mxu0 %v251
    %636 = vmatpush.msra.mxu0 %v249
    %637 = vmatpush.msra.mxu0 %v247
    %638 = vmatpush.msra.mxu0 %v245
    %639 = vmatpush.msra.mxu0 %v243
    %640 = vmatpush.msra.mxu0 %v241
    %641 = vmatpush.msra.mxu0 %v239
    %642 = vmatpush.msra.mxu0 %v237
    %643 = vmatmul.f32.gmra.mxu0 %v625
    %v644 = vpop.f32.mrf.mxu0
    %v645 = vadd.f32 %v622, %v644
    %646 = vdwg.mxu0
    %647 = vmatpush.msra.mxu0 0.0
    %648 = vmatpush.msra.mxu0 0.0
    %649 = vmatpush.msra.mxu0 0.0
    %650 = vmatpush.msra.mxu0 0.0
    %651 = vmatpush.msra.mxu0 0.0
    %652 = vmatpush.msra.mxu0 0.0
    %653 = vmatpush.msra.mxu0 0.0
    %654 = vmatpush.msra.mxu0 0.0
    %655 = vmatpush.msra.mxu0 %v252
    %656 = vmatpush.msra.mxu0 %v250
    %657 = vmatpush.msra.mxu0 %v248
    %658 = vmatpush.msra.mxu0 %v246
    %659 = vmatpush.msra.mxu0 %v244
    %660 = vmatpush.msra.mxu0 %v242
    %661 = vmatpush.msra.mxu0 %v240
    %662 = vmatpush.msra.mxu0 %v238
    %663 = vmatmul.f32.gmra.mxu0 %v625
    %v664 = vpop.f32.mrf.mxu0
    %v665 = vadd.f32 %v623, %v664
    %666 = vdwg.mxu0
    %v667 = vxor.u32 %v645, 2147483648
    %v668 = vxor.u32 %v665, 2147483648
    %v669 = vmul.f32 %v667, 1.442695
    %v670 = vpow.pop %v669
    %v671 = vmul.f32 %v668, 1.442695
    %v672 = vpow.pop %v671
    %v673 = vadd.f32 %v670, 1.0
    %v674 = vadd.f32 %v672, 1.0
    %v675 = vrcp.pop %v673
    %v676 = vmul.f32 %v673, %v675
    %v677 = vsub.f32 1.0, %v676
    %v678 = vmul.f32 %v675, %v677
    %v679 = vadd.f32 %v675, %v678
    %vm680 = vweird.f32 %v673
    %vm681 = vweird.f32 %v675
    %vm682 = vmor %vm680, %vm681
    %v683 = vsel %vm682, %v675, %v679
    %v684 = vand.u32 2147483647, %v673
    %vm685 = vcmp.eq.f32.partialorder %v684, 8.507059e+37
    %v686 = vand.u32 %v673, 2147483648
    %v687 = vor.u32 1.1754944e-38, %v686
    %v688 = vsel %vm685, %v687, %v683
    %v689 = vmul.f32 1.0, %v688
    %v690 = vrcp.pop %v674
    %v691 = vmul.f32 %v674, %v690
    %v692 = vsub.f32 1.0, %v691
    %v693 = vmul.f32 %v690, %v692
    %v694 = vadd.f32 %v690, %v693
    %vm695 = vweird.f32 %v674
    %vm696 = vweird.f32 %v690
    %vm697 = vmor %vm695, %vm696
    %v698 = vsel %vm697, %v690, %v694
    %v699 = vand.u32 2147483647, %v674
    %vm700 = vcmp.eq.f32.partialorder %v699, 8.507059e+37
    %v701 = vand.u32 %v674, 2147483648
    %v702 = vor.u32 1.1754944e-38, %v701
    %v703 = vsel %vm700, %v702, %v698
    %v704 = vmul.f32 1.0, %v703
    %v705 = vtanh.pop %v665
    %v706 = vmul.f32 %v689, %v605
    %708 = vrot.lane.b32.xlu0 %v705, 64
    %v709 = vpop.permute.xlu0 %708
    %v711 = vmul.f32 %v689, %v709
    %713 = vrot.lane.b32.xlu0 %v711, 64
    %v714 = vpop.permute.xlu0 %713
    %v716 = vadd.f32 %v706, %v714
    %v717 = vtanh.pop %v716
    %719 = vrot.lane.b32.xlu0 %v717, 64
    %v720 = vpop.permute.xlu0 %719
    %v722 = vmul.f32 %v704, %v720
    %s723 = scalar_lea.vmem [#allocation3], 24
    %724 = vst.msk [vmem:[%s723] sm:$0xff] %vm389, %v722
    %s725 = scalar_lea.vmem [#allocation3], 32
    %726 = vst.msk [vmem:[%s725] sm:$0xff] %vm392, %v722
    %v727 = vld [vmem:[%s619] sm:$0xff]
    %v728 = vld [vmem:[%s619 + $0x8] sm:$0xff]
    %v729 = vld [vmem:[%s616] sm:$0xff]
    %v730 = vld [vmem:[%s616 + $0x8] sm:$0xff]
    %v731 = vsel %vm280, %v727, %v729
    %v732 = vsel %vm281, %v728, %v730
    %v734 = vsel %vm289, %v722, 0
    %736 = vmatpush.msra.mxu0 0.0
    %737 = vmatpush.msra.mxu0 0.0
    %738 = vmatpush.msra.mxu0 0.0
    %739 = vmatpush.msra.mxu0 0.0
    %740 = vmatpush.msra.mxu0 0.0
    %741 = vmatpush.msra.mxu0 0.0
    %742 = vmatpush.msra.mxu0 0.0
    %743 = vmatpush.msra.mxu0 0.0
    %744 = vmatpush.msra.mxu0 %v251
    %745 = vmatpush.msra.mxu0 %v249
    %746 = vmatpush.msra.mxu0 %v247
    %747 = vmatpush.msra.mxu0 %v245
    %748 = vmatpush.msra.mxu0 %v243
    %749 = vmatpush.msra.mxu0 %v241
    %750 = vmatpush.msra.mxu0 %v239
    %751 = vmatpush.msra.mxu0 %v237
    %752 = vmatmul.f32.gmra.mxu0 %v734
    %v753 = vpop.f32.mrf.mxu0
    %v754 = vadd.f32 %v731, %v753
    %755 = vdwg.mxu0
    %756 = vmatpush.msra.mxu0 0.0
    %757 = vmatpush.msra.mxu0 0.0
    %758 = vmatpush.msra.mxu0 0.0
    %759 = vmatpush.msra.mxu0 0.0
    %760 = vmatpush.msra.mxu0 0.0
    %761 = vmatpush.msra.mxu0 0.0
    %762 = vmatpush.msra.mxu0 0.0
    %763 = vmatpush.msra.mxu0 0.0
    %764 = vmatpush.msra.mxu0 %v252
    %765 = vmatpush.msra.mxu0 %v250
    %766 = vmatpush.msra.mxu0 %v248
    %767 = vmatpush.msra.mxu0 %v246
    %768 = vmatpush.msra.mxu0 %v244
    %769 = vmatpush.msra.mxu0 %v242
    %770 = vmatpush.msra.mxu0 %v240
    %771 = vmatpush.msra.mxu0 %v238
    %772 = vmatmul.f32.gmra.mxu0 %v734
    %v773 = vpop.f32.mrf.mxu0
    %v774 = vadd.f32 %v732, %v773
    %775 = vdwg.mxu0
    %v776 = vxor.u32 %v754, 2147483648
    %v777 = vxor.u32 %v774, 2147483648
    %v778 = vmul.f32 %v776, 1.442695
    %v779 = vpow.pop %v778
    %v780 = vmul.f32 %v777, 1.442695
    %v781 = vpow.pop %v780
    %v782 = vadd.f32 %v779, 1.0
    %v783 = vadd.f32 %v781, 1.0
    %v784 = vrcp.pop %v782
    %v785 = vmul.f32 %v782, %v784
    %v786 = vsub.f32 1.0, %v785
    %v787 = vmul.f32 %v784, %v786
    %v788 = vadd.f32 %v784, %v787
    %vm789 = vweird.f32 %v782
    %vm790 = vweird.f32 %v784
    %vm791 = vmor %vm789, %vm790
    %v792 = vsel %vm791, %v784, %v788
    %v793 = vand.u32 2147483647, %v782
    %vm794 = vcmp.eq.f32.partialorder %v793, 8.507059e+37
    %v795 = vand.u32 %v782, 2147483648
    %v796 = vor.u32 1.1754944e-38, %v795
    %v797 = vsel %vm794, %v796, %v792
    %v798 = vmul.f32 1.0, %v797
    %v799 = vrcp.pop %v783
    %v800 = vmul.f32 %v783, %v799
    %v801 = vsub.f32 1.0, %v800
    %v802 = vmul.f32 %v799, %v801
    %v803 = vadd.f32 %v799, %v802
    %vm804 = vweird.f32 %v783
    %vm805 = vweird.f32 %v799
    %vm806 = vmor %vm804, %vm805
    %v807 = vsel %vm806, %v799, %v803
    %v808 = vand.u32 2147483647, %v783
    %vm809 = vcmp.eq.f32.partialorder %v808, 8.507059e+37
    %v810 = vand.u32 %v783, 2147483648
    %v811 = vor.u32 1.1754944e-38, %v810
    %v812 = vsel %vm809, %v811, %v807
    %v813 = vmul.f32 1.0, %v812
    %v814 = vtanh.pop %v774
    %v815 = vmul.f32 %v798, %v716
    %817 = vrot.lane.b32.xlu0 %v814, 64
    %v818 = vpop.permute.xlu0 %817
    %v820 = vmul.f32 %v798, %v818
    %822 = vrot.lane.b32.xlu0 %v820, 64
    %v823 = vpop.permute.xlu0 %822
    %v825 = vadd.f32 %v815, %v823
    %v826 = vtanh.pop %v825
    %828 = vrot.lane.b32.xlu0 %v826, 64
    %v829 = vpop.permute.xlu0 %828
    %v831 = vmul.f32 %v813, %v829
    %832 = vst.msk [vmem:[%s725] sm:$0xff] %vm389, %v831
    %833 = vst.msk [vmem:[%s723] sm:$0xff] %vm392, %v831
    %v834 = vld [vmem:[%s508] sm:$0xff]
    %v835 = vld [vmem:[%s508 + $0x8] sm:$0xff]
    %v836 = vld [vmem:[%s505] sm:$0xff]
    %v837 = vld [vmem:[%s505 + $0x8] sm:$0xff]
    %v838 = vsel %vm280, %v834, %v836
    %v839 = vsel %vm281, %v835, %v837
    %v841 = vsel %vm289, %v831, 0
    %843 = vmatpush.msra.mxu0 0.0
    %844 = vmatpush.msra.mxu0 0.0
    %845 = vmatpush.msra.mxu0 0.0
    %846 = vmatpush.msra.mxu0 0.0
    %847 = vmatpush.msra.mxu0 0.0
    %848 = vmatpush.msra.mxu0 0.0
    %849 = vmatpush.msra.mxu0 0.0
    %850 = vmatpush.msra.mxu0 0.0
    %851 = vmatpush.msra.mxu0 %v251
    %852 = vmatpush.msra.mxu0 %v249
    %853 = vmatpush.msra.mxu0 %v247
    %854 = vmatpush.msra.mxu0 %v245
    %855 = vmatpush.msra.mxu0 %v243
    %856 = vmatpush.msra.mxu0 %v241
    %857 = vmatpush.msra.mxu0 %v239
    %858 = vmatpush.msra.mxu0 %v237
    %859 = vmatmul.f32.gmra.mxu0 %v841
    %v860 = vpop.f32.mrf.mxu0
    %v861 = vadd.f32 %v838, %v860
    %862 = vdwg.mxu0
    %863 = vmatpush.msra.mxu0 0.0
    %864 = vmatpush.msra.mxu0 0.0
    %865 = vmatpush.msra.mxu0 0.0
    %866 = vmatpush.msra.mxu0 0.0
    %867 = vmatpush.msra.mxu0 0.0
    %868 = vmatpush.msra.mxu0 0.0
    %869 = vmatpush.msra.mxu0 0.0
    %870 = vmatpush.msra.mxu0 0.0
    %871 = vmatpush.msra.mxu0 %v252
    %872 = vmatpush.msra.mxu0 %v250
    %873 = vmatpush.msra.mxu0 %v248
    %874 = vmatpush.msra.mxu0 %v246
    %875 = vmatpush.msra.mxu0 %v244
    %876 = vmatpush.msra.mxu0 %v242
    %877 = vmatpush.msra.mxu0 %v240
    %878 = vmatpush.msra.mxu0 %v238
    %879 = vmatmul.f32.gmra.mxu0 %v841
    %v880 = vpop.f32.mrf.mxu0
    %v881 = vadd.f32 %v839, %v880
    %882 = vdwg.mxu0
    %v883 = vxor.u32 %v861, 2147483648
    %v884 = vxor.u32 %v881, 2147483648
    %v885 = vmul.f32 %v883, 1.442695
    %v886 = vpow.pop %v885
    %v887 = vmul.f32 %v884, 1.442695
    %v888 = vpow.pop %v887
    %v889 = vadd.f32 %v886, 1.0
    %v890 = vadd.f32 %v888, 1.0
    %v891 = vrcp.pop %v889
    %v892 = vmul.f32 %v889, %v891
    %v893 = vsub.f32 1.0, %v892
    %v894 = vmul.f32 %v891, %v893
    %v895 = vadd.f32 %v891, %v894
    %vm896 = vweird.f32 %v889
    %vm897 = vweird.f32 %v891
    %vm898 = vmor %vm896, %vm897
    %v899 = vsel %vm898, %v891, %v895
    %v900 = vand.u32 2147483647, %v889
    %vm901 = vcmp.eq.f32.partialorder %v900, 8.507059e+37
    %v902 = vand.u32 %v889, 2147483648
    %v903 = vor.u32 1.1754944e-38, %v902
    %v904 = vsel %vm901, %v903, %v899
    %v905 = vmul.f32 1.0, %v904
    %v906 = vrcp.pop %v890
    %v907 = vmul.f32 %v890, %v906
    %v908 = vsub.f32 1.0, %v907
    %v909 = vmul.f32 %v906, %v908
    %v910 = vadd.f32 %v906, %v909
    %vm911 = vweird.f32 %v890
    %vm912 = vweird.f32 %v906
    %vm913 = vmor %vm911, %vm912
    %v914 = vsel %vm913, %v906, %v910
    %v915 = vand.u32 2147483647, %v890
    %vm916 = vcmp.eq.f32.partialorder %v915, 8.507059e+37
    %v917 = vand.u32 %v890, 2147483648
    %v918 = vor.u32 1.1754944e-38, %v917
    %v919 = vsel %vm916, %v918, %v914
    %v920 = vmul.f32 1.0, %v919
    %v921 = vtanh.pop %v881
    %v922 = vmul.f32 %v905, %v825
    %924 = vrot.lane.b32.xlu0 %v921, 64
    %v925 = vpop.permute.xlu0 %924
    %v927 = vmul.f32 %v905, %v925
    %929 = vrot.lane.b32.xlu0 %v927, 64
    %v930 = vpop.permute.xlu0 %929
    %v932 = vadd.f32 %v922, %v930
    %v933 = vtanh.pop %v932
    %935 = vrot.lane.b32.xlu0 %v933, 64
    %v936 = vpop.permute.xlu0 %935
    %v938 = vmul.f32 %v920, %v936
    %939 = vst.msk [vmem:[%s614] sm:$0xff] %vm389, %v938
    %940 = vst.msk [vmem:[%s612] sm:$0xff] %vm392, %v938
    %v941 = vld [vmem:[%s397] sm:$0xff]
    %v942 = vld [vmem:[%s397 + $0x8] sm:$0xff]
    %v943 = vld [vmem:[%s394] sm:$0xff]
    %v944 = vld [vmem:[%s394 + $0x8] sm:$0xff]
    %v945 = vsel %vm280, %v941, %v943
    %v946 = vsel %vm281, %v942, %v944
    %v948 = vsel %vm289, %v938, 0
    %950 = vmatpush.msra.mxu0 0.0
    %951 = vmatpush.msra.mxu0 0.0
    %952 = vmatpush.msra.mxu0 0.0
    %953 = vmatpush.msra.mxu0 0.0
    %954 = vmatpush.msra.mxu0 0.0
    %955 = vmatpush.msra.mxu0 0.0
    %956 = vmatpush.msra.mxu0 0.0
    %957 = vmatpush.msra.mxu0 0.0
    %958 = vmatpush.msra.mxu0 %v251
    %959 = vmatpush.msra.mxu0 %v249
    %960 = vmatpush.msra.mxu0 %v247
    %961 = vmatpush.msra.mxu0 %v245
    %962 = vmatpush.msra.mxu0 %v243
    %963 = vmatpush.msra.mxu0 %v241
    %964 = vmatpush.msra.mxu0 %v239
    %965 = vmatpush.msra.mxu0 %v237
    %966 = vmatmul.f32.gmra.mxu0 %v948
    %v967 = vpop.f32.mrf.mxu0
    %v968 = vadd.f32 %v945, %v967
    %969 = vdwg.mxu0
    %970 = vmatpush.msra.mxu0 0.0
    %971 = vmatpush.msra.mxu0 0.0
    %972 = vmatpush.msra.mxu0 0.0
    %973 = vmatpush.msra.mxu0 0.0
    %974 = vmatpush.msra.mxu0 0.0
    %975 = vmatpush.msra.mxu0 0.0
    %976 = vmatpush.msra.mxu0 0.0
    %977 = vmatpush.msra.mxu0 0.0
    %978 = vmatpush.msra.mxu0 %v252
    %979 = vmatpush.msra.mxu0 %v250
    %980 = vmatpush.msra.mxu0 %v248
    %981 = vmatpush.msra.mxu0 %v246
    %982 = vmatpush.msra.mxu0 %v244
    %983 = vmatpush.msra.mxu0 %v242
    %984 = vmatpush.msra.mxu0 %v240
    %985 = vmatpush.msra.mxu0 %v238
    %986 = vmatmul.f32.gmra.mxu0 %v948
    %v987 = vpop.f32.mrf.mxu0
    %v988 = vadd.f32 %v946, %v987
    %989 = vdwg.mxu0
    %v990 = vxor.u32 %v968, 2147483648
    %v991 = vxor.u32 %v988, 2147483648
    %v992 = vmul.f32 %v990, 1.442695
    %v993 = vpow.pop %v992
    %v994 = vmul.f32 %v991, 1.442695
    %v995 = vpow.pop %v994
    %v996 = vadd.f32 %v993, 1.0
    %v997 = vadd.f32 %v995, 1.0
    %v998 = vrcp.pop %v996
    %v999 = vmul.f32 %v996, %v998
    %v1000 = vsub.f32 1.0, %v999
    %v1001 = vmul.f32 %v998, %v1000
    %v1002 = vadd.f32 %v998, %v1001
    %vm1003 = vweird.f32 %v996
    %vm1004 = vweird.f32 %v998
    %vm1005 = vmor %vm1003, %vm1004
    %v1006 = vsel %vm1005, %v998, %v1002
    %v1007 = vand.u32 2147483647, %v996
    %vm1008 = vcmp.eq.f32.partialorder %v1007, 8.507059e+37
    %v1009 = vand.u32 %v996, 2147483648
    %v1010 = vor.u32 1.1754944e-38, %v1009
    %v1011 = vsel %vm1008, %v1010, %v1006
    %v1012 = vmul.f32 1.0, %v1011
    %v1013 = vrcp.pop %v997
    %v1014 = vmul.f32 %v997, %v1013
    %v1015 = vsub.f32 1.0, %v1014
    %v1016 = vmul.f32 %v1013, %v1015
    %v1017 = vadd.f32 %v1013, %v1016
    %vm1018 = vweird.f32 %v997
    %vm1019 = vweird.f32 %v1013
    %vm1020 = vmor %vm1018, %vm1019
    %v1021 = vsel %vm1020, %v1013, %v1017
    %v1022 = vand.u32 2147483647, %v997
    %vm1023 = vcmp.eq.f32.partialorder %v1022, 8.507059e+37
    %v1024 = vand.u32 %v997, 2147483648
    %v1025 = vor.u32 1.1754944e-38, %v1024
    %v1026 = vsel %vm1023, %v1025, %v1021
    %v1027 = vmul.f32 1.0, %v1026
    %v1028 = vtanh.pop %v988
    %v1029 = vmul.f32 %v1012, %v932
    %1031 = vrot.lane.b32.xlu0 %v1028, 64
    %v1032 = vpop.permute.xlu0 %1031
    %v1034 = vmul.f32 %v1012, %v1032
    %1036 = vrot.lane.b32.xlu0 %v1034, 64
    %v1037 = vpop.permute.xlu0 %1036
    %v1039 = vadd.f32 %v1029, %v1037
    %v1040 = vtanh.pop %v1039
    %1042 = vrot.lane.b32.xlu0 %v1040, 64
    %v1043 = vpop.permute.xlu0 %1042
    %v1045 = vmul.f32 %v1027, %v1043
    %1046 = vst.msk [vmem:[%s503] sm:$0xff] %vm389, %v1045
    %1047 = vst.msk [vmem:[%s501] sm:$0xff] %vm392, %v1045
    %v1048 = vld [vmem:[%s284] sm:$0xff]
    %v1049 = vld [vmem:[%s284 + $0x8] sm:$0xff]
    %v1050 = vld [vmem:[#allocation2] sm:$0xff]
    %v1051 = vld [vmem:[#allocation2 + $0x8] sm:$0xff]
    %v1052 = vsel %vm280, %v1048, %v1050
    %v1053 = vsel %vm281, %v1049, %v1051
    %v1055 = vsel %vm289, %v1045, 0
    %1057 = vmatpush.msra.mxu0 0.0
    %1058 = vmatpush.msra.mxu0 0.0
    %1059 = vmatpush.msra.mxu0 0.0
    %1060 = vmatpush.msra.mxu0 0.0
    %1061 = vmatpush.msra.mxu0 0.0
    %1062 = vmatpush.msra.mxu0 0.0
    %1063 = vmatpush.msra.mxu0 0.0
    %1064 = vmatpush.msra.mxu0 0.0
    %1065 = vmatpush.msra.mxu0 %v251
    %1066 = vmatpush.msra.mxu0 %v249
    %1067 = vmatpush.msra.mxu0 %v247
    %1068 = vmatpush.msra.mxu0 %v245
    %1069 = vmatpush.msra.mxu0 %v243
    %1070 = vmatpush.msra.mxu0 %v241
    %1071 = vmatpush.msra.mxu0 %v239
    %1072 = vmatpush.msra.mxu0 %v237
    %1073 = vmatmul.f32.gmra.mxu0 %v1055
    %v1074 = vpop.f32.mrf.mxu0
    %v1075 = vadd.f32 %v1052, %v1074
    %1076 = vdwg.mxu0
    %1077 = vmatpush.msra.mxu0 0.0
    %1078 = vmatpush.msra.mxu0 0.0
    %1079 = vmatpush.msra.mxu0 0.0
    %1080 = vmatpush.msra.mxu0 0.0
    %1081 = vmatpush.msra.mxu0 0.0
    %1082 = vmatpush.msra.mxu0 0.0
    %1083 = vmatpush.msra.mxu0 0.0
    %1084 = vmatpush.msra.mxu0 0.0
    %1085 = vmatpush.msra.mxu0 %v252
    %1086 = vmatpush.msra.mxu0 %v250
    %1087 = vmatpush.msra.mxu0 %v248
    %1088 = vmatpush.msra.mxu0 %v246
    %1089 = vmatpush.msra.mxu0 %v244
    %1090 = vmatpush.msra.mxu0 %v242
    %1091 = vmatpush.msra.mxu0 %v240
    %1092 = vmatpush.msra.mxu0 %v238
    %1093 = vmatmul.f32.gmra.mxu0 %v1055
    %v1094 = vpop.f32.mrf.mxu0
    %v1095 = vadd.f32 %v1053, %v1094
    %1096 = vdwg.mxu0
    %v1097 = vxor.u32 %v1075, 2147483648
    %v1098 = vxor.u32 %v1095, 2147483648
    %v1099 = vmul.f32 %v1097, 1.442695
    %v1100 = vpow.pop %v1099
    %v1101 = vmul.f32 %v1098, 1.442695
    %v1102 = vpow.pop %v1101
    %v1103 = vadd.f32 %v1100, 1.0
    %v1104 = vadd.f32 %v1102, 1.0
    %v1105 = vrcp.pop %v1103
    %v1106 = vmul.f32 %v1103, %v1105
    %v1107 = vsub.f32 1.0, %v1106
    %v1108 = vmul.f32 %v1105, %v1107
    %v1109 = vadd.f32 %v1105, %v1108
    %vm1110 = vweird.f32 %v1103
    %vm1111 = vweird.f32 %v1105
    %vm1112 = vmor %vm1110, %vm1111
    %v1113 = vsel %vm1112, %v1105, %v1109
    %v1114 = vand.u32 2147483647, %v1103
    %vm1115 = vcmp.eq.f32.partialorder %v1114, 8.507059e+37
    %v1116 = vand.u32 %v1103, 2147483648
    %v1117 = vor.u32 1.1754944e-38, %v1116
    %v1118 = vsel %vm1115, %v1117, %v1113
    %v1119 = vmul.f32 1.0, %v1118
    %v1120 = vrcp.pop %v1104
    %v1121 = vmul.f32 %v1104, %v1120
    %v1122 = vsub.f32 1.0, %v1121
    %v1123 = vmul.f32 %v1120, %v1122
    %v1124 = vadd.f32 %v1120, %v1123
    %vm1125 = vweird.f32 %v1104
    %vm1126 = vweird.f32 %v1120
    %vm1127 = vmor %vm1125, %vm1126
    %v1128 = vsel %vm1127, %v1120, %v1124
    %v1129 = vand.u32 2147483647, %v1104
    %vm1130 = vcmp.eq.f32.partialorder %v1129, 8.507059e+37
    %v1131 = vand.u32 %v1104, 2147483648
    %v1132 = vor.u32 1.1754944e-38, %v1131
    %v1133 = vsel %vm1130, %v1132, %v1128
    %v1134 = vmul.f32 1.0, %v1133
    %v1135 = vtanh.pop %v1095
    %v1136 = vmul.f32 %v1119, %v1039
    %1138 = vrot.lane.b32.xlu0 %v1135, 64
    %v1139 = vpop.permute.xlu0 %1138
    %v1141 = vmul.f32 %v1119, %v1139
    %1143 = vrot.lane.b32.xlu0 %v1141, 64
    %v1144 = vpop.permute.xlu0 %1143
    %v1146 = vadd.f32 %v1136, %v1144
    %v1147 = vtanh.pop %v1146
    %1149 = vrot.lane.b32.xlu0 %v1147, 64
    %v1150 = vpop.permute.xlu0 %1149
    %v1152 = vmul.f32 %v1134, %v1150
    %1153 = vst.msk [vmem:[%s391] sm:$0xff] %vm389, %v1152
    %1154 = vst.msk [vmem:[#allocation3] sm:$0xff] %vm392, %v1152
    %v1155 = vld [vmem:[#allocation3] sm:$0xff]
    %v1156 = vld [vmem:[#allocation3 + $0x8] sm:$0xff]
    %v1157 = vld [vmem:[#allocation3 + $0x10] sm:$0xff]
    %v1158 = vld [vmem:[#allocation3 + $0x18] sm:$0xff]
    %v1159 = vld [vmem:[#allocation3 + $0x20] sm:$0xff]
    %v1160 = vld [vmem:[#allocation3 + $0x28] sm:$0xff]
    %v1161 = vld [vmem:[#allocation3 + $0x30] sm:$0xff]
    %v1162 = vld [vmem:[#allocation3 + $0x38] sm:$0xff]
    %v1163 = vld [vmem:[#allocation10] sm:$0xff]
    %v1164 = vld [vmem:[#allocation10 + $0x8] sm:$0xff]
    %v1165 = vld [vmem:[#allocation10 + $0x10] sm:$0xff]
    %v1166 = vld [vmem:[#allocation10 + $0x18] sm:$0xff]
    %v1167 = vld [vmem:[#allocation10 + $0x20] sm:$0xff]
    %v1168 = vld [vmem:[#allocation10 + $0x28] sm:$0xff]
    %v1169 = vld [vmem:[#allocation10 + $0x30] sm:$0xff]
    %v1170 = vld [vmem:[#allocation10 + $0x38] sm:$0xff]
    %v1171 = vld [vmem:[%s5] sm:$0x1]
    %v1173 = vperm.slane %v1171, 0
    %v1176 = vsel %vm289, %v1155, 0
    %v1179 = vsel %vm289, %v1156, 0
    %v1182 = vsel %vm289, %v1157, 0
    %v1185 = vsel %vm289, %v1158, 0
    %v1188 = vsel %vm289, %v1159, 0
    %v1191 = vsel %vm289, %v1160, 0
    %v1194 = vsel %vm289, %v1161, 0
    %v1197 = vsel %vm289, %v1162, 0
    %1199 = vmatpush.msra.mxu0 0.0
    %1200 = vmatpush.msra.mxu0 0.0
    %1201 = vmatpush.msra.mxu0 0.0
    %1202 = vmatpush.msra.mxu0 0.0
    %1203 = vmatpush.msra.mxu0 0.0
    %1204 = vmatpush.msra.mxu0 0.0
    %1205 = vmatpush.msra.mxu0 0.0
    %1206 = vmatpush.msra.mxu0 0.0
    %1207 = vmatpush.msra.mxu0 %v1170
    %1208 = vmatpush.msra.mxu0 %v1169
    %1209 = vmatpush.msra.mxu0 %v1168
    %1210 = vmatpush.msra.mxu0 %v1167
    %1211 = vmatpush.msra.mxu0 %v1166
    %1212 = vmatpush.msra.mxu0 %v1165
    %1213 = vmatpush.msra.mxu0 %v1164
    %1214 = vmatpush.msra.mxu0 %v1163
    %1215 = vmatmul.f32.gmra.mxu0 %v1176
    %v1216 = vpop.f32.mrf.mxu0
    %v1217 = vadd.f32 %v1173, %v1216
    %1218 = vmatmul.f32.gmra.mxu0 %v1179
    %v1219 = vpop.f32.mrf.mxu0
    %v1220 = vadd.f32 %v1173, %v1219
    %1221 = vmatmul.f32.gmra.mxu0 %v1182
    %v1222 = vpop.f32.mrf.mxu0
    %v1223 = vadd.f32 %v1173, %v1222
    %1224 = vmatmul.f32.gmra.mxu0 %v1185
    %v1225 = vpop.f32.mrf.mxu0
    %v1226 = vadd.f32 %v1173, %v1225
    %1227 = vmatmul.f32.gmra.mxu0 %v1188
    %v1228 = vpop.f32.mrf.mxu0
    %v1229 = vadd.f32 %v1173, %v1228
    %1230 = vmatmul.f32.gmra.mxu0 %v1191
    %v1231 = vpop.f32.mrf.mxu0
    %v1232 = vadd.f32 %v1173, %v1231
    %1233 = vmatmul.f32.gmra.mxu0 %v1194
    %v1234 = vpop.f32.mrf.mxu0
    %v1235 = vadd.f32 %v1173, %v1234
    %1236 = vmatmul.f32.gmra.mxu0 %v1197
    %v1237 = vpop.f32.mrf.mxu0
    %v1238 = vadd.f32 %v1173, %v1237
    %1239 = vdwg.mxu0
    %1240 = vst [vmem:[#allocation12] sm:$0xff] %v1217
    %1241 = vst [vmem:[#allocation12 + $0x8] sm:$0xff] %v1220
    %1242 = vst [vmem:[#allocation12 + $0x10] sm:$0xff] %v1223
    %1243 = vst [vmem:[#allocation12 + $0x18] sm:$0xff] %v1226
    %1244 = vst [vmem:[#allocation12 + $0x20] sm:$0xff] %v1229
    %1245 = vst [vmem:[#allocation12 + $0x28] sm:$0xff] %v1232
    %1246 = vst [vmem:[#allocation12 + $0x30] sm:$0xff] %v1235
    %1247 = vst [vmem:[#allocation12 + $0x38] sm:$0xff] %v1238
    // Predicated region
    $region42: #{tpu_custom_call.1} parent=1 // pred_check
      _
    $region43: #{tpu_custom_call.1} parent=1 // pred_check_branch
      %1249 = sbr.rel (0) target = $region45
    $region44: #{tpu_custom_call.1} parent=1 // pred_region
      %1251 = vsyncadd [#allocation6], 0
      %s1252 = sshll.u32 [#allocation12], 4
      %s1253 = int_to_ptr.vmem [resolvable:$true] %s1252
      %s1254 = sshll.u32 %s6, 4
      %s1255 = int_to_ptr.hbm [resolvable:$true] %s1254
      %1260 = dma.vmem_to_hbm [thread:$0]  %s1253, 1024, %s1255, [#allocation6], 128, 128, 8
    $region45: #{tpu_custom_call.1} parent=1 // pred_fallthru
      _
    // Predicated region
    $region46: #{tpu_custom_call.1} parent=1 // pred_check
      _
    $region47: #{tpu_custom_call.1} parent=1 // pred_check_branch
      %1262 = sbr.rel (0) target = $region49
    $region48: #{tpu_custom_call.1} parent=1 // pred_region
      %1264 = dma.done [#allocation6], 1024
    $region49: #{tpu_custom_call.1} parent=1 // pred_fallthru
      _
    %1265 = vsyncpa [#allocation5], 1
    %1266 = vsyncpa [#allocation8], 1
    %1267 = vsyncpa [#allocation11], 1
    %1268 = vsyncpa [#allocation6], 1

</llo_original>
